<compile_context>
chip_gen: v7x
topology: tpu7x:2x2x1
jax: 0.10.0
libtpu: 0.0.40
codegen_flags: <defaults>
</compile_context>

<pallas_src>
import jax
import jax.numpy as jnp
from jax.experimental import pallas as pl
from jax.experimental.pallas import tpu as pltpu

NEG_INF = -1e30   # Python float -> literal inside the kernel (no captured const)
LANES = 128


def _round_up(x, m):
    return (x + m - 1) // m * m


def _make_kernel(tile_n, d2):
    n_chunks = tile_n // LANES

    def kernel(n_valid_ref,                                   # scalar prefetch
               h_ref, eye_ref, w1_ref, b1_ref, wab_ref, bab_ref, wc_ref, bc_ref,
               a_raw_ref, m_part_ref, l_part_ref, acc_part_ref,
               m_sc, l_sc, acc_sc):
        c = pl.program_id(0)            # core / parallel axis
        t = pl.program_id(1)            # sequential tile axis within the core
        n_inner = pl.num_programs(1)
        n_valid = n_valid_ref[0]

        @pl.when(t == 0)
        def _():
            m_sc[...] = jnp.full_like(m_sc, NEG_INF)
            l_sc[...] = jnp.zeros_like(l_sc)
            acc_sc[...] = jnp.zeros_like(acc_sc)

        # fc: Linear + ReLU   (Dropout(0.25) is identity in eval mode)
        hidden = jnp.maximum(
            jnp.dot(h_ref[...], w1_ref[...],
                    preferred_element_type=jnp.float32) + b1_ref[...],
            0.0)                                              # (TN, D1) f32

        # Attn_Net_Gated: fused Wa|Wb matmul, then split + gate.
        ab = jnp.dot(hidden.astype(wab_ref.dtype), wab_ref[...],
                     preferred_element_type=jnp.float32) + bab_ref[...]
        gate = jnp.tanh(ab[:, :d2]) * jax.nn.sigmoid(ab[:, d2:])   # (TN, D2)

        # attention_c: degenerate (out=1) matmul as VPU mul + lane reduce.
        # TODO(synk): profile-gated alternative is jnp.dot(gate, wc_col) on MXU.
        s = jnp.sum(gate * wc_ref[...], axis=-1, keepdims=True) + bc_ref[...]

        # Mask rows beyond the real bag size (h was zero-padded in the wrapper).
        tile_idx = c * n_inner + t
        row = tile_idx * tile_n + jax.lax.broadcasted_iota(
            jnp.int32, (tile_n, 1), 0)
        s = jnp.where(row < n_valid, s, NEG_INF)

        # Lane-dense raw-score writeout: (TN,1) -> (1,TN), 128 rows at a time,
        # via a trans-A MXU dot against the resident 128x128 identity (frees
        # the VPU/XLU slots the old broadcast-mul + sublane-reduce used).
        eye = eye_ref[...]
        for j in range(n_chunks):
            col = s[j * LANES:(j + 1) * LANES, :]             # (128, 1)
            a_raw_ref[:, j * LANES:(j + 1) * LANES] = jax.lax.dot_general(
                col, eye, (((0,), (0,)), ((), ())),
                preferred_element_type=jnp.float32)           # (1, 128)

        # Online softmax + attention pooling (per-core partial state).
        tile_max = jnp.max(s, axis=0, keepdims=True)          # (1, 1)
        m_new = jnp.maximum(m_sc[...], tile_max)
        alpha = jnp.exp(m_sc[...] - m_new)
        p = jnp.exp(s - m_new)                                 # (TN, 1)
        l_sc[...] = alpha * l_sc[...] + jnp.sum(p, axis=0, keepdims=True)
        # p.T @ hidden (M=1 matmul + transpose) -> VPU multiply + sublane reduce.
        acc_sc[...] = alpha * acc_sc[...] + jnp.sum(p * hidden, axis=0,
                                                    keepdims=True)   # (1, D1)
        m_sc[...] = m_new

        @pl.when(t == n_inner - 1)
        def _():
            m_part_ref[...] = m_sc[...]
            l_part_ref[...] = l_sc[...]
            acc_part_ref[...] = acc_sc[...]

    return kernel


def rcc_mil_forward(h, params, *, tile_n=None, use_bf16=False, num_cores=2):
    """RCC_MIL forward (eval mode). Returns bag_logits, attention_raw, M."""
    h = jnp.asarray(h, jnp.float32)
    N, L0 = h.shape
    D1 = params["w1"].shape[1]
    D2 = params["wa"].shape[1]

    if tile_n is None:
        tile_n = min(_round_up(N, LANES), 1024)   # >=128, MXU/lane aligned
    assert tile_n % LANES == 0

    # Only use the second TensorCore if every core gets at least one real tile.
    if _round_up(N, tile_n) // tile_n < num_cores:
        num_cores = 1

    N_pad = _round_up(N, num_cores * tile_n)
    n_inner = N_pad // (num_cores * tile_n)
    grid = (num_cores, n_inner)

    if N_pad != N:
        h = jnp.pad(h, ((0, N_pad - N), (0, 0)))

    # Fuse the two gating linears into a single matmul operand.
    wab = jnp.concatenate([params["wa"], params["wb"]], axis=1)    # (D1, 2*D2)
    bab = jnp.concatenate([params["ba"], params["bb"]], axis=1)    # (1, 2*D2)
    wc_row = params["wc"].reshape(1, D2)                           # (1, D2)

    # bf16 only at the MXU operand boundary; biases / VPU math stay f32.
    # use_bf16=True halves the only O(N) HBM stream (h) -> use for large bags.
    mxu_dtype = jnp.bfloat16 if use_bf16 else jnp.float32
    h_in = h.astype(mxu_dtype)
    w1_in = params["w1"].astype(mxu_dtype)
    wab_in = wab.astype(mxu_dtype)

    eye128 = jnp.eye(LANES, dtype=jnp.float32)
    n_valid = jnp.array([N], dtype=jnp.int32)   # runtime scalar (SMEM prefetch)

    kernel = _make_kernel(tile_n, D2)

    def const(shape):
        return pl.BlockSpec(shape, lambda c, t, n: (0, 0))

    in_specs = [
        pl.BlockSpec((tile_n, L0), lambda c, t, n: (c * n_inner + t, 0)),  # h
        const((LANES, LANES)),                          # eye128 (resident)
        const((L0, D1)), const((1, D1)),                # w1, b1
        const((D1, 2 * D2)), const((1, 2 * D2)),        # wab, bab
        const((1, D2)), const((1, 1)),                  # wc_row, bc
    ]
    out_specs = [
        pl.BlockSpec((1, tile_n), lambda c, t, n: (0, c * n_inner + t)),  # A_raw
        pl.BlockSpec((None, 1, 1), lambda c, t, n: (c, 0, 0)),    # m partial
        pl.BlockSpec((None, 1, 1), lambda c, t, n: (c, 0, 0)),    # l partial
        pl.BlockSpec((None, 1, D1), lambda c, t, n: (c, 0, 0)),   # acc partial
    ]
    out_shapes = (
        jax.ShapeDtypeStruct((1, N_pad), jnp.float32),
        jax.ShapeDtypeStruct((num_cores, 1, 1), jnp.float32),
        jax.ShapeDtypeStruct((num_cores, 1, 1), jnp.float32),
        jax.ShapeDtypeStruct((num_cores, 1, D1), jnp.float32),
    )

    a_raw, m_part, l_part, acc_part = pl.pallas_call(
        kernel,
        out_shape=out_shapes,
        grid_spec=pltpu.PrefetchScalarGridSpec(
            num_scalar_prefetch=1,
            grid=grid,
            in_specs=in_specs,
            out_specs=out_specs,
            scratch_shapes=[
                pltpu.VMEM((1, 1), jnp.float32),        # running max
                pltpu.VMEM((1, 1), jnp.float32),        # running sum
                pltpu.VMEM((1, D1), jnp.float32),       # weighted-hidden acc
            ]),
        compiler_params=pltpu.CompilerParams(
            dimension_semantics=("parallel", "arbitrary")),
    )(n_valid, h_in, eye128, w1_in, params["b1"], wab_in, bab,
      wc_row, params["bc"])

    # Cross-core log-sum-exp combine + classifier (tiny; plain JAX).
    m_part = m_part.reshape(num_cores, 1)
    l_part = l_part.reshape(num_cores, 1)
    acc_part = acc_part.reshape(num_cores, D1)
    m_max = jnp.max(m_part, axis=0, keepdims=True)               # (1, 1)
    w = jnp.exp(m_part - m_max)                                  # (NC, 1)
    l = jnp.sum(w * l_part, axis=0, keepdims=True)               # (1, 1)
    acc = jnp.sum(w * acc_part, axis=0, keepdims=True)           # (1, D1)
    M = acc / l
    logits = M @ params["wcls"] + params["bcls"]                 # (1, C)

    return {
        "bag_logits": logits,
        "attention_raw": a_raw[:, :N],   # padded tail (sentinel) sliced off
        "M": M,
    }


def _ref_forward(h, p):
    """Pure-JAX reference for correctness checking."""
    hidden = jnp.maximum(h @ p["w1"] + p["b1"], 0.0)
    a = jnp.tanh(hidden @ p["wa"] + p["ba"])
    b = jax.nn.sigmoid(hidden @ p["wb"] + p["bb"])
    A = (a * b) @ p["wc"] + p["bc"]                 # (N, 1)
    A_raw = A.T                                     # (1, N)
    M = jax.nn.softmax(A_raw, axis=1) @ hidden      # (1, D1)
    logits = M @ p["wcls"] + p["bcls"]
    return {"bag_logits": logits, "attention_raw": A_raw, "M": M}


def make_params(key, L0, D1, D2, n_classes):
    ks = jax.random.split(key, 10)
    scale = 0.02
    return {
        "w1":   scale * jax.random.normal(ks[0], (L0, D1), jnp.float32),
        "b1":   scale * jax.random.normal(ks[1], (1, D1), jnp.float32),
        "wa":   scale * jax.random.normal(ks[2], (D1, D2), jnp.float32),
        "ba":   scale * jax.random.normal(ks[3], (1, D2), jnp.float32),
        "wb":   scale * jax.random.normal(ks[4], (D1, D2), jnp.float32),
        "bb":   scale * jax.random.normal(ks[5], (1, D2), jnp.float32),
        "wc":   scale * jax.random.normal(ks[6], (D2, 1), jnp.float32),
        "bc":   scale * jax.random.normal(ks[7], (1, 1), jnp.float32),
        "wcls": scale * jax.random.normal(ks[8], (D1, n_classes), jnp.float32),
        "bcls": scale * jax.random.normal(ks[9], (1, n_classes), jnp.float32),
    }


if __name__ == "__main__":
    # Module-consistent shapes: size_dict['xs'] = [384, 256, 256], n_classes=4.
    L0, D1, D2, C = 384, 256, 256, 4
    key = jax.random.PRNGKey(0)
    k_h1, k_h2, k_h3, k_p = jax.random.split(key, 4)
    params = make_params(k_p, L0, D1, D2, C)

    # Case 1: small bag -> single tile / single core (plain softmax path).
    N1 = 64
    h1 = jax.random.normal(k_h1, (N1, L0), jnp.float32)
    out1 = rcc_mil_forward(h1, params)
    jax.block_until_ready(out1)
    ref1 = _ref_forward(h1, params)
    assert jnp.allclose(out1["bag_logits"], ref1["bag_logits"], atol=1e-4, rtol=1e-4)
    assert jnp.allclose(out1["attention_raw"], ref1["attention_raw"], atol=1e-4, rtol=1e-4)
    assert jnp.allclose(out1["M"], ref1["M"], atol=1e-4, rtol=1e-4)

    # Case 2: multi-tile + 2-core split + ragged padding (300 -> 512, grid=(2,2)).
    N2 = 300
    h2 = jax.random.normal(k_h2, (N2, L0), jnp.float32)
    out2 = rcc_mil_forward(h2, params, tile_n=128)
    jax.block_until_ready(out2)
    ref2 = _ref_forward(h2, params)
    assert jnp.allclose(out2["bag_logits"], ref2["bag_logits"], atol=1e-4, rtol=1e-4)
    assert jnp.allclose(out2["attention_raw"], ref2["attention_raw"], atol=1e-4, rtol=1e-4)
    assert jnp.allclose(out2["M"], ref2["M"], atol=1e-4, rtol=1e-4)

    # Case 3: default large tile (tile_n=1024) + 2-core split (1100 -> 2048).
    N3 = 1100
    h3 = jax.random.normal(k_h3, (N3, L0), jnp.float32)
    out3 = rcc_mil_forward(h3, params)
    jax.block_until_ready(out3)
    ref3 = _ref_forward(h3, params)
    assert jnp.allclose(out3["bag_logits"], ref3["bag_logits"], atol=1e-4, rtol=1e-4)
    assert jnp.allclose(out3["attention_raw"], ref3["attention_raw"], atol=1e-4, rtol=1e-4)
    assert jnp.allclose(out3["M"], ref3["M"], atol=1e-4, rtol=1e-4)

    # Case 4: bf16-streamed h / bf16 MXU operands (f32 accumulation) — loose tol,
    # including the attention_raw check requested in review.
    out4 = rcc_mil_forward(h2, params, use_bf16=True)
    jax.block_until_ready(out4)
    assert jnp.allclose(out4["bag_logits"], ref2["bag_logits"], atol=3e-2, rtol=3e-2)
    assert jnp.allclose(out4["M"], ref2["M"], atol=3e-2, rtol=3e-2)
    assert jnp.allclose(out4["attention_raw"], ref2["attention_raw"], atol=3e-2, rtol=3e-2)

    print("KERNEL_OK")
</pallas_src>

<mosaic_0001>
module attributes {stable_mosaic.version = 11 : i64} {
  func.func @kernel(%arg0: i32, %arg1: i32, %arg2: memref<1xi32, #tpu.memory_space<smem>>, %arg3: memref<128x384xf32, #tpu.memory_space<vmem>>, %arg4: memref<128x128xf32, #tpu.memory_space<vmem>>, %arg5: memref<384x256xf32, #tpu.memory_space<vmem>>, %arg6: memref<1x256xf32, #tpu.memory_space<vmem>>, %arg7: memref<256x512xf32, #tpu.memory_space<vmem>>, %arg8: memref<1x512xf32, #tpu.memory_space<vmem>>, %arg9: memref<1x256xf32, #tpu.memory_space<vmem>>, %arg10: memref<1x1xf32, #tpu.memory_space<vmem>>, %arg11: memref<1x128xf32, #tpu.memory_space<vmem>>, %arg12: memref<1x1x1xf32, #tpu.memory_space<vmem>>, %arg13: memref<1x1x1xf32, #tpu.memory_space<vmem>>, %arg14: memref<1x1x256xf32, #tpu.memory_space<vmem>>, %arg15: memref<1x1xf32, #tpu.memory_space<vmem>>, %arg16: memref<1x1xf32, #tpu.memory_space<vmem>>, %arg17: memref<1x256xf32, #tpu.memory_space<vmem>>) attributes {dimension_semantics = [#tpu.dimension_semantics<parallel>, #tpu.dimension_semantics<arbitrary>], iteration_bounds = array<i64: 1, 1>, scalar_prefetch = 1 : i64, scratch_operands = 3 : i64, tpu.core_type = #tpu.core_type<tc>, window_params = [{transform_indices = @transform_0, window_bounds = array<i64: 128, 384>}, {pipeline_mode = #tpu.pipeline_mode<synchronous>, transform_indices = @transform_1, window_bounds = array<i64: 128, 128>}, {pipeline_mode = #tpu.pipeline_mode<synchronous>, transform_indices = @transform_2, window_bounds = array<i64: 384, 256>}, {pipeline_mode = #tpu.pipeline_mode<synchronous>, transform_indices = @transform_3, window_bounds = array<i64: 1, 256>}, {pipeline_mode = #tpu.pipeline_mode<synchronous>, transform_indices = @transform_4, window_bounds = array<i64: 256, 512>}, {pipeline_mode = #tpu.pipeline_mode<synchronous>, transform_indices = @transform_5, window_bounds = array<i64: 1, 512>}, {pipeline_mode = #tpu.pipeline_mode<synchronous>, transform_indices = @transform_6, window_bounds = array<i64: 1, 256>}, {pipeline_mode = #tpu.pipeline_mode<synchronous>, transform_indices = @transform_7, window_bounds = array<i64: 1, 1>}, {transform_indices = @transform_8, window_bounds = array<i64: 1, 128>}, {transform_indices = @transform_9, window_bounds = array<i64: 1, 1, 1>}, {transform_indices = @transform_10, window_bounds = array<i64: 1, 1, 1>}, {transform_indices = @transform_11, window_bounds = array<i64: 1, 1, 256>}]} {
    %c0 = arith.constant 0 : index
    %0 = memref.load %arg2[%c0] : memref<1xi32, #tpu.memory_space<smem>>
    %c0_i32 = arith.constant 0 : i32
    %1 = arith.cmpi eq, %arg1, %c0_i32 : i32
    %2 = arith.extui %1 : i1 to i32
    %c0_i32_0 = arith.constant 0 : i32
    %3 = arith.cmpi ne, %2, %c0_i32_0 : i32
    scf.if %3 {
      %cst_44 = arith.constant -1.000000e+30 : f32
      %76 = vector.broadcast %cst_44 : f32 to vector<1x1xf32>
      %c0_45 = arith.constant 0 : index
      %c0_46 = arith.constant 0 : index
      %77 = vector.load %arg15[%c0_45, %c0_46] : memref<1x1xf32, #tpu.memory_space<vmem>>, vector<1x1xf32>
      tpu.vector_store %arg15[%c0_45, %c0_46], %76 {strides = array<i32>} : memref<1x1xf32, #tpu.memory_space<vmem>>, vector<1x1xf32>,
      %cst_47 = arith.constant 0.000000e+00 : f32
      %78 = vector.broadcast %cst_47 : f32 to vector<1x1xf32>
      %c0_48 = arith.constant 0 : index
      %c0_49 = arith.constant 0 : index
      %79 = vector.load %arg16[%c0_48, %c0_49] : memref<1x1xf32, #tpu.memory_space<vmem>>, vector<1x1xf32>
      tpu.vector_store %arg16[%c0_48, %c0_49], %78 {strides = array<i32>} : memref<1x1xf32, #tpu.memory_space<vmem>>, vector<1x1xf32>,
      %cst_50 = arith.constant 0.000000e+00 : f32
      %80 = vector.broadcast %cst_50 : f32 to vector<1x256xf32>
      %c0_51 = arith.constant 0 : index
      %c0_52 = arith.constant 0 : index
      %81 = vector.load %arg17[%c0_51, %c0_52] : memref<1x256xf32, #tpu.memory_space<vmem>>, vector<1x256xf32>
      tpu.vector_store %arg17[%c0_51, %c0_52], %80 {strides = array<i32>} : memref<1x256xf32, #tpu.memory_space<vmem>>, vector<1x256xf32>,
    } else {
    }
    %c0_1 = arith.constant 0 : index
    %c0_2 = arith.constant 0 : index
    %4 = vector.load %arg3[%c0_1, %c0_2] : memref<128x384xf32, #tpu.memory_space<vmem>>, vector<128x384xf32>
    %c0_3 = arith.constant 0 : index
    %c0_4 = arith.constant 0 : index
    %5 = vector.load %arg5[%c0_3, %c0_4] : memref<384x256xf32, #tpu.memory_space<vmem>>, vector<384x256xf32>
    %cst = arith.constant dense<0.000000e+00> : vector<128x256xf32>
    %6 = tpu.matmul %4, %5, %cst {dimension_numbers = #tpu.dot_dimension_numbers<[1], [0], [0], [1], [0, 0, 1, 1], [], []>} : vector<128x384xf32>, vector<384x256xf32>, vector<128x256xf32> -> vector<128x256xf32>
    %c0_5 = arith.constant 0 : index
    %c0_6 = arith.constant 0 : index
    %7 = vector.load %arg6[%c0_5, %c0_6] : memref<1x256xf32, #tpu.memory_space<vmem>>, vector<1x256xf32>
    %8 = vector.broadcast %7 : vector<1x256xf32> to vector<128x256xf32>
    %9 = arith.addf %6, %8 : vector<128x256xf32>
    %cst_7 = arith.constant 0.000000e+00 : f32
    %10 = vector.broadcast %cst_7 : f32 to vector<128x256xf32>
    %11 = arith.maximumf %9, %10 : vector<128x256xf32>
    %c0_8 = arith.constant 0 : index
    %c0_9 = arith.constant 0 : index
    %12 = vector.load %arg7[%c0_8, %c0_9] : memref<256x512xf32, #tpu.memory_space<vmem>>, vector<256x512xf32>
    %cst_10 = arith.constant dense<0.000000e+00> : vector<128x512xf32>
    %13 = tpu.matmul %11, %12, %cst_10 {dimension_numbers = #tpu.dot_dimension_numbers<[1], [0], [0], [1], [0, 0, 1, 1], [], []>} : vector<128x256xf32>, vector<256x512xf32>, vector<128x512xf32> -> vector<128x512xf32>
    %c0_11 = arith.constant 0 : index
    %c0_12 = arith.constant 0 : index
    %14 = vector.load %arg8[%c0_11, %c0_12] : memref<1x512xf32, #tpu.memory_space<vmem>>, vector<1x512xf32>
    %15 = vector.broadcast %14 : vector<1x512xf32> to vector<128x512xf32>
    %16 = arith.addf %13, %15 : vector<128x512xf32>
    %17 = vector.extract_strided_slice %16 {offsets = [0, 0], sizes = [128, 256], strides = [1, 1]} : vector<128x512xf32> to vector<128x256xf32>
    %18 = math.tanh %17 : vector<128x256xf32>
    %19 = vector.extract_strided_slice %16 {offsets = [0, 256], sizes = [128, 256], strides = [1, 1]} : vector<128x512xf32> to vector<128x256xf32>
    %20 = arith.negf %19 : vector<128x256xf32>
    %21 = math.exp %20 : vector<128x256xf32>
    %cst_13 = arith.constant 1.000000e+00 : f32
    %22 = vector.broadcast %cst_13 : f32 to vector<128x256xf32>
    %23 = arith.addf %22, %21 : vector<128x256xf32>
    %24 = arith.divf %22, %23 : vector<128x256xf32>
    %25 = arith.mulf %18, %24 : vector<128x256xf32>
    %c0_14 = arith.constant 0 : index
    %c0_15 = arith.constant 0 : index
    %26 = vector.load %arg9[%c0_14, %c0_15] : memref<1x256xf32, #tpu.memory_space<vmem>>, vector<1x256xf32>
    %27 = vector.broadcast %26 : vector<1x256xf32> to vector<128x256xf32>
    %28 = arith.mulf %25, %27 : vector<128x256xf32>
    %cst_16 = arith.constant dense<0.000000e+00> : vector<128xf32>
    %29 = vector.multi_reduction <add>, %28, %cst_16 [1] : vector<128x256xf32> to vector<128xf32>
    %30 = vector.shape_cast %29 : vector<128xf32> to vector<128x1xf32>
    %c0_17 = arith.constant 0 : index
    %c0_18 = arith.constant 0 : index
    %31 = vector.load %arg10[%c0_17, %c0_18] : memref<1x1xf32, #tpu.memory_space<vmem>>, vector<1x1xf32>
    %32 = vector.broadcast %31 : vector<1x1xf32> to vector<128x1xf32>
    %33 = arith.addf %30, %32 : vector<128x1xf32>
    %c1_i32 = arith.constant 1 : i32
    %34 = arith.muli %arg0, %c1_i32 : i32
    %35 = arith.addi %34, %arg1 : i32
    %c128_i32 = arith.constant 128 : i32
    %36 = arith.muli %35, %c128_i32 : i32
    %37 = tpu.iota {dimensions = array<i32: 0>} : vector<128x1xi32>
    %38 = vector.broadcast %36 : i32 to vector<128x1xi32>
    %39 = arith.addi %38, %37 : vector<128x1xi32>
    %40 = vector.broadcast %0 : i32 to vector<128x1xi32>
    %41 = arith.cmpi slt, %39, %40 : vector<128x1xi32>
    %cst_19 = arith.constant -1.000000e+30 : f32
    %42 = vector.broadcast %cst_19 : f32 to vector<128x1xf32>
    %43 = arith.select %41, %33, %42 : vector<128x1xi1>, vector<128x1xf32>
    %c0_20 = arith.constant 0 : index
    %c0_21 = arith.constant 0 : index
    %44 = vector.load %arg4[%c0_20, %c0_21] : memref<128x128xf32, #tpu.memory_space<vmem>>, vector<128x128xf32>
    %cst_22 = arith.constant dense<0.000000e+00> : vector<1x128xf32>
    %45 = tpu.matmul %43, %44, %cst_22 {dimension_numbers = #tpu.dot_dimension_numbers<[0], [0], [1], [1], [0, 1, 1, 1], [], []>} : vector<128x1xf32>, vector<128x128xf32>, vector<1x128xf32> -> vector<1x128xf32>
    %c0_23 = arith.constant 0 : index
    %c0_24 = arith.constant 0 : index
    %46 = vector.load %arg11[%c0_23, %c0_24] : memref<1x128xf32, #tpu.memory_space<vmem>>, vector<1x128xf32>
    tpu.vector_store %arg11[%c0_23, %c0_24], %45 {strides = array<i32>} : memref<1x128xf32, #tpu.memory_space<vmem>>, vector<1x128xf32>,
    %cst_25 = arith.constant dense<0xFF800000> : vector<1xf32>
    %47 = vector.multi_reduction <maximumf>, %43, %cst_25 [0] : vector<128x1xf32> to vector<1xf32>
    %48 = vector.shape_cast %47 : vector<1xf32> to vector<1x1xf32>
    %c0_26 = arith.constant 0 : index
    %c0_27 = arith.constant 0 : index
    %49 = vector.load %arg15[%c0_26, %c0_27] : memref<1x1xf32, #tpu.memory_space<vmem>>, vector<1x1xf32>
    %50 = arith.maximumf %49, %48 : vector<1x1xf32>
    %c0_28 = arith.constant 0 : index
    %c0_29 = arith.constant 0 : index
    %51 = vector.load %arg15[%c0_28, %c0_29] : memref<1x1xf32, #tpu.memory_space<vmem>>, vector<1x1xf32>
    %52 = arith.subf %51, %50 : vector<1x1xf32>
    %53 = math.exp %52 : vector<1x1xf32>
    %54 = vector.broadcast %50 : vector<1x1xf32> to vector<128x1xf32>
    %55 = arith.subf %43, %54 : vector<128x1xf32>
    %56 = math.exp %55 : vector<128x1xf32>
    %c0_30 = arith.constant 0 : index
    %c0_31 = arith.constant 0 : index
    %57 = vector.load %arg16[%c0_30, %c0_31] : memref<1x1xf32, #tpu.memory_space<vmem>>, vector<1x1xf32>
    %58 = arith.mulf %53, %57 : vector<1x1xf32>
    %cst_32 = arith.constant dense<0.000000e+00> : vector<1xf32>
    %59 = vector.multi_reduction <add>, %56, %cst_32 [0] : vector<128x1xf32> to vector<1xf32>
    %60 = vector.shape_cast %59 : vector<1xf32> to vector<1x1xf32>
    %61 = arith.addf %58, %60 : vector<1x1xf32>
    %c0_33 = arith.constant 0 : index
    %c0_34 = arith.constant 0 : index
    %62 = vector.load %arg16[%c0_33, %c0_34] : memref<1x1xf32, #tpu.memory_space<vmem>>, vector<1x1xf32>
    tpu.vector_store %arg16[%c0_33, %c0_34], %61 {strides = array<i32>} : memref<1x1xf32, #tpu.memory_space<vmem>>, vector<1x1xf32>,
    %c0_35 = arith.constant 0 : index
    %c0_36 = arith.constant 0 : index
    %63 = vector.load %arg17[%c0_35, %c0_36] : memref<1x256xf32, #tpu.memory_space<vmem>>, vector<1x256xf32>
    %64 = vector.broadcast %53 : vector<1x1xf32> to vector<1x256xf32>
    %65 = arith.mulf %64, %63 : vector<1x256xf32>
    %66 = vector.broadcast %56 : vector<128x1xf32> to vector<128x256xf32>
    %67 = arith.mulf %66, %11 : vector<128x256xf32>
    %cst_37 = arith.constant dense<0.000000e+00> : vector<256xf32>
    %68 = vector.multi_reduction <add>, %67, %cst_37 [0] : vector<128x256xf32> to vector<256xf32>
    %69 = vector.shape_cast %68 : vector<256xf32> to vector<1x256xf32>
    %70 = arith.addf %65, %69 : vector<1x256xf32>
    %c0_38 = arith.constant 0 : index
    %c0_39 = arith.constant 0 : index
    %71 = vector.load %arg17[%c0_38, %c0_39] : memref<1x256xf32, #tpu.memory_space<vmem>>, vector<1x256xf32>
    tpu.vector_store %arg17[%c0_38, %c0_39], %70 {strides = array<i32>} : memref<1x256xf32, #tpu.memory_space<vmem>>, vector<1x256xf32>,
    %c0_40 = arith.constant 0 : index
    %c0_41 = arith.constant 0 : index
    %72 = vector.load %arg15[%c0_40, %c0_41] : memref<1x1xf32, #tpu.memory_space<vmem>>, vector<1x1xf32>
    tpu.vector_store %arg15[%c0_40, %c0_41], %50 {strides = array<i32>} : memref<1x1xf32, #tpu.memory_space<vmem>>, vector<1x1xf32>,
    %c0_i32_42 = arith.constant 0 : i32
    %73 = arith.cmpi eq, %arg1, %c0_i32_42 : i32
    %74 = arith.extui %73 : i1 to i32
    %c0_i32_43 = arith.constant 0 : i32
    %75 = arith.cmpi ne, %74, %c0_i32_43 : i32
    scf.if %75 {
      %c0_44 = arith.constant 0 : index
      %c0_45 = arith.constant 0 : index
      %76 = vector.load %arg15[%c0_44, %c0_45] : memref<1x1xf32, #tpu.memory_space<vmem>>, vector<1x1xf32>
      %c0_46 = arith.constant 0 : index
      %c0_47 = arith.constant 0 : index
      %c0_48 = arith.constant 0 : index
      %77 = vector.load %arg12[%c0_46, %c0_47, %c0_48] : memref<1x1x1xf32, #tpu.memory_space<vmem>>, vector<1x1x1xf32>
      %78 = vector.shape_cast %77 : vector<1x1x1xf32> to vector<1x1xf32>
      %79 = vector.shape_cast %76 : vector<1x1xf32> to vector<1x1x1xf32>
      tpu.vector_store %arg12[%c0_46, %c0_47, %c0_48], %79 {strides = array<i32>} : memref<1x1x1xf32, #tpu.memory_space<vmem>>, vector<1x1x1xf32>,
      %c0_49 = arith.constant 0 : index
      %c0_50 = arith.constant 0 : index
      %80 = vector.load %arg16[%c0_49, %c0_50] : memref<1x1xf32, #tpu.memory_space<vmem>>, vector<1x1xf32>
      %c0_51 = arith.constant 0 : index
      %c0_52 = arith.constant 0 : index
      %c0_53 = arith.constant 0 : index
      %81 = vector.load %arg13[%c0_51, %c0_52, %c0_53] : memref<1x1x1xf32, #tpu.memory_space<vmem>>, vector<1x1x1xf32>
      %82 = vector.shape_cast %81 : vector<1x1x1xf32> to vector<1x1xf32>
      %83 = vector.shape_cast %80 : vector<1x1xf32> to vector<1x1x1xf32>
      tpu.vector_store %arg13[%c0_51, %c0_52, %c0_53], %83 {strides = array<i32>} : memref<1x1x1xf32, #tpu.memory_space<vmem>>, vector<1x1x1xf32>,
      %c0_54 = arith.constant 0 : index
      %c0_55 = arith.constant 0 : index
      %84 = vector.load %arg17[%c0_54, %c0_55] : memref<1x256xf32, #tpu.memory_space<vmem>>, vector<1x256xf32>
      %c0_56 = arith.constant 0 : index
      %c0_57 = arith.constant 0 : index
      %c0_58 = arith.constant 0 : index
      %85 = vector.load %arg14[%c0_56, %c0_57, %c0_58] : memref<1x1x256xf32, #tpu.memory_space<vmem>>, vector<1x1x256xf32>
      %86 = vector.shape_cast %85 : vector<1x1x256xf32> to vector<1x256xf32>
      %87 = vector.shape_cast %84 : vector<1x256xf32> to vector<1x1x256xf32>
      tpu.vector_store %arg14[%c0_56, %c0_57, %c0_58], %87 {strides = array<i32>} : memref<1x1x256xf32, #tpu.memory_space<vmem>>, vector<1x1x256xf32>,
    } else {
    }
    return
  }
  func.func @transform_0(%arg0: i32, %arg1: i32, %arg2: memref<1xi32, #tpu.memory_space<smem>>) -> (i32, i32) {
    %c1_i32 = arith.constant 1 : i32
    %0 = arith.muli %arg0, %c1_i32 : i32
    %1 = arith.addi %0, %arg1 : i32
    %c0_i32 = arith.constant 0 : i32
    %c0_i32_0 = arith.constant 0 : i32
    return %1, %c0_i32 : i32, i32
  }
  func.func @transform_1(%arg0: i32, %arg1: i32, %arg2: memref<1xi32, #tpu.memory_space<smem>>) -> (i32, i32) {
    %c0_i32 = arith.constant 0 : i32
    %c0_i32_0 = arith.constant 0 : i32
    %c0_i32_1 = arith.constant 0 : i32
    return %c0_i32, %c0_i32_0 : i32, i32
  }
  func.func @transform_2(%arg0: i32, %arg1: i32, %arg2: memref<1xi32, #tpu.memory_space<smem>>) -> (i32, i32) {
    %c0_i32 = arith.constant 0 : i32
    %c0_i32_0 = arith.constant 0 : i32
    %c0_i32_1 = arith.constant 0 : i32
    return %c0_i32, %c0_i32_0 : i32, i32
  }
  func.func @transform_3(%arg0: i32, %arg1: i32, %arg2: memref<1xi32, #tpu.memory_space<smem>>) -> (i32, i32) {
    %c0_i32 = arith.constant 0 : i32
    %c0_i32_0 = arith.constant 0 : i32
    %c0_i32_1 = arith.constant 0 : i32
    return %c0_i32, %c0_i32_0 : i32, i32
  }
  func.func @transform_4(%arg0: i32, %arg1: i32, %arg2: memref<1xi32, #tpu.memory_space<smem>>) -> (i32, i32) {
    %c0_i32 = arith.constant 0 : i32
    %c0_i32_0 = arith.constant 0 : i32
    %c0_i32_1 = arith.constant 0 : i32
    return %c0_i32, %c0_i32_0 : i32, i32
  }
  func.func @transform_5(%arg0: i32, %arg1: i32, %arg2: memref<1xi32, #tpu.memory_space<smem>>) -> (i32, i32) {
    %c0_i32 = arith.constant 0 : i32
    %c0_i32_0 = arith.constant 0 : i32
    %c0_i32_1 = arith.constant 0 : i32
    return %c0_i32, %c0_i32_0 : i32, i32
  }
  func.func @transform_6(%arg0: i32, %arg1: i32, %arg2: memref<1xi32, #tpu.memory_space<smem>>) -> (i32, i32) {
    %c0_i32 = arith.constant 0 : i32
    %c0_i32_0 = arith.constant 0 : i32
    %c0_i32_1 = arith.constant 0 : i32
    return %c0_i32, %c0_i32_0 : i32, i32
  }
  func.func @transform_7(%arg0: i32, %arg1: i32, %arg2: memref<1xi32, #tpu.memory_space<smem>>) -> (i32, i32) {
    %c0_i32 = arith.constant 0 : i32
    %c0_i32_0 = arith.constant 0 : i32
    %c0_i32_1 = arith.constant 0 : i32
    return %c0_i32, %c0_i32_0 : i32, i32
  }
  func.func @transform_8(%arg0: i32, %arg1: i32, %arg2: memref<1xi32, #tpu.memory_space<smem>>) -> (i32, i32) {
    %c1_i32 = arith.constant 1 : i32
    %0 = arith.muli %arg0, %c1_i32 : i32
    %1 = arith.addi %0, %arg1 : i32
    %c0_i32 = arith.constant 0 : i32
    %c0_i32_0 = arith.constant 0 : i32
    return %c0_i32, %1 : i32, i32
  }
  func.func @transform_9(%arg0: i32, %arg1: i32, %arg2: memref<1xi32, #tpu.memory_space<smem>>) -> (i32, i32, i32) {
    %c0_i32 = arith.constant 0 : i32
    %c0_i32_0 = arith.constant 0 : i32
    %c0_i32_1 = arith.constant 0 : i32
    return %arg0, %c0_i32, %c0_i32_0 : i32, i32, i32
  }
  func.func @transform_10(%arg0: i32, %arg1: i32, %arg2: memref<1xi32, #tpu.memory_space<smem>>) -> (i32, i32, i32) {
    %c0_i32 = arith.constant 0 : i32
    %c0_i32_0 = arith.constant 0 : i32
    %c0_i32_1 = arith.constant 0 : i32
    return %arg0, %c0_i32, %c0_i32_0 : i32, i32, i32
  }
  func.func @transform_11(%arg0: i32, %arg1: i32, %arg2: memref<1xi32, #tpu.memory_space<smem>>) -> (i32, i32, i32) {
    %c0_i32 = arith.constant 0 : i32
    %c0_i32_0 = arith.constant 0 : i32
    %c0_i32_1 = arith.constant 0 : i32
    return %arg0, %c0_i32, %c0_i32_0 : i32, i32, i32
  }
}

</mosaic_0001>

<llo_original>
// kernel: tpu_custom_call.1
$region0: #{tpu_custom_call.1}
  #allocation0 [shape = 'u32[]', space=smem, size = 0x4, offset = 0x4, fixed_abs, tag = 'smem constant byte address 0x4 - core index']
  #allocation1 [shape = 'u32[144,128]{1,0:T(1,128)}', space=vmem, size = 0x12000, scoped, tag = 'internal scratch']
  #allocation2 [shape = 'f32[1,1]{1,0:T(1,128)}', space=vmem, size = 0x200, scoped, tag = 'scratch operand']
  #allocation3 [shape = 'f32[1,1]{1,0:T(1,128)}', space=vmem, size = 0x200, scoped, tag = 'scratch operand']
  #allocation4 [shape = 'f32[1,256]{1,0:T(1,128)}', space=vmem, size = 0x400, scoped, tag = 'scratch operand']
  #allocation5 [shape = 's32[1]{0}', space=sflag, size = 0x4, scoped, tag = 'scoped memory for tpu_custom_call.1']
  #allocation6 [shape = 's32[1]{0:T(128)S(6)}', space=smem, size = 0x200, scoped, tag = 'prefetched SMEM operand 0']
  #allocation7 [shape = 'f32[1,1]{1,0:T(1,128)S(1)}', space=vmem, size = 0x200, scoped, tag = 'scoped memory for tpu_custom_call.1']
  %s0 = inlined_call_operand.<no memory space> [shape: s32[1], index: 0, kind: input, shape index: {}]
  %s1 = inlined_call_operand.hbm [shape: f32[128,384], index: 1, kind: input, shape index: {}]
  %s2 = inlined_call_operand.hbm [shape: f32[128,128], index: 2, kind: input, shape index: {}]
  %s3 = inlined_call_operand.hbm [shape: f32[384,256], index: 3, kind: input, shape index: {}]
  %s4 = inlined_call_operand.vmem [shape: f32[1,256], index: 4, kind: input, shape index: {}]
  %s5 = inlined_call_operand.hbm [shape: f32[256,512], index: 5, kind: input, shape index: {}]
  %s6 = inlined_call_operand.vmem [shape: f32[1,512], index: 6, kind: input, shape index: {}]
  %s7 = inlined_call_operand.vmem [shape: f32[1,256], index: 7, kind: input, shape index: {}]
  %s8 = inlined_call_operand.<no memory space> [shape: f32[1,1], index: 8, kind: input, shape index: {}]
  %s9 = inlined_call_operand.hbm [shape: f32[1,128], index: 9, kind: output, shape index: {0}]
  %s10 = inlined_call_operand.hbm [shape: f32[1,1,1], index: 10, kind: output, shape index: {1}]
  %s11 = inlined_call_operand.hbm [shape: f32[1,1,1], index: 11, kind: output, shape index: {2}]
  %s12 = inlined_call_operand.hbm [shape: f32[1,1,256], index: 12, kind: output, shape index: {3}]
  %13 = xla_tuple %s9, %s10, %s11, %s12
  %s14 = sld [smem:[#allocation0]]
  $region90: #{tpu_custom_call.1} parent=0
    _
  %s16 = ssub.s32 1, %s14
  %s17 = scalar_select 0, %s16, %s14
  %18 = sst [smem:[#allocation6]] %s0
  %v19 = vstv %s8
  %20 = vst [vmem:[#allocation7] sm:$0x1] %v19
  $region1: #{tpu_custom_call.1} parent=0
    #allocation8 [shape = 'u8[196608]{0}', space=vmem, size = 0x30000, scoped, tag = 'input window, operand 1, single buffered']
    #allocation9 [shape = 's32[1]{0}', space=sflag, size = 0x4, scoped, tag = 'scoped memory for tpu_custom_call.1']
    #allocation10 [shape = 's32[1]{0}', space=sflag, size = 0x4, scoped, tag = 'scoped memory for tpu_custom_call.1']
    #allocation11 [shape = 'u8[65536]{0}', space=vmem, size = 0x10000, scoped, tag = 'input window, operand 2, single buffered']
    #allocation12 [shape = 's32[1]{0}', space=sflag, size = 0x4, scoped, tag = 'scoped memory for tpu_custom_call.1']
    #allocation13 [shape = 'u8[393216]{0}', space=vmem, size = 0x60000, scoped, tag = 'input window, operand 3, single buffered']
    #allocation14 [shape = 'u8[524288]{0}', space=vmem, size = 0x80000, scoped, tag = 'input window, operand 5, single buffered']
    #allocation15 [shape = 's32[1]{0}', space=sflag, size = 0x4, scoped, tag = 'scoped memory for tpu_custom_call.1']
    #allocation16 [shape = 'u8[512]{0}', space=vmem, size = 0x400, scoped, tag = 'output window, operand 0, single buffered']
    #allocation17 [shape = 'u8[512]{0}', space=vmem, size = 0x400, scoped, tag = 'output window, operand 1, single buffered']
    #allocation18 [shape = 's32[1]{0}', space=sflag, size = 0x4, scoped, tag = 'scoped memory for tpu_custom_call.1']
    #allocation19 [shape = 'u8[512]{0}', space=vmem, size = 0x400, scoped, tag = 'output window, operand 2, single buffered']
    #allocation20 [shape = 'u8[1024]{0}', space=vmem, size = 0x400, scoped, tag = 'output window, operand 3, single buffered']
    #allocation21 [shape = 's32[1]{0}', space=sflag, size = 0x4, scoped, tag = 'scoped memory for tpu_custom_call.1']
    %21 = vsyncpa [#allocation9], 0
    %22 = vsyncpa [#allocation12], 0
    %23 = vsyncpa [#allocation15], 0
    %24 = vsyncpa [#allocation10], 0
    %25 = vsyncpa [#allocation18], 0
    %26 = vsyncpa [#allocation21], 0
    // Predicated region
    $region2: #{tpu_custom_call.1} parent=1 // pred_check
      _
    $region3: #{tpu_custom_call.1} parent=1 // pred_check_branch
      %28 = sbr.rel (0) target = $region5
    $region4: #{tpu_custom_call.1} parent=1 // pred_region
      %s29 = sadd.s32 0, 0
      %s30 = smul.u32 16, %s29
      %s32 = ssub.s32 6144, 6144
      %33 = vsyncadd [#allocation9], %s32
      %s34 = smul.addr %s30, 3
      %s35 = smul.addr %s34, 128
      %s36 = scalar_lea.hbm %s1, %s35
      %s37 = sshll.u32 [#allocation8], 4
      %s38 = int_to_ptr.vmem [resolvable:$true] %s37
      %43 = dma.hbm_to_vmem [thread:$0]  %s36, 6144, %s38, [#allocation9], 384, 384, 24
    $region5: #{tpu_custom_call.1} parent=1 // pred_fallthru
      _
    // Predicated region
    $region6: #{tpu_custom_call.1} parent=1 // pred_check
      _
    $region7: #{tpu_custom_call.1} parent=1 // pred_check_branch
      %45 = sbr.rel (0) target = $region9
    $region8: #{tpu_custom_call.1} parent=1 // pred_region
      %s47 = ssub.s32 2048, 2048
      %48 = vsyncadd [#allocation12], %s47
      %s49 = sshll.u32 [#allocation11], 4
      %s50 = int_to_ptr.vmem [resolvable:$true] %s49
      %55 = dma.hbm_to_vmem [thread:$0]  %s2, 2048, %s50, [#allocation12], 128, 128, 8
    $region9: #{tpu_custom_call.1} parent=1 // pred_fallthru
      _
    // Predicated region
    $region10: #{tpu_custom_call.1} parent=1 // pred_check
      _
    $region11: #{tpu_custom_call.1} parent=1 // pred_check_branch
      %57 = sbr.rel (0) target = $region13
    $region12: #{tpu_custom_call.1} parent=1 // pred_region
      %s59 = ssub.s32 12288, 12288
      %60 = vsyncadd [#allocation12], %s59
      %s61 = sshll.u32 [#allocation13], 4
      %s62 = int_to_ptr.vmem [resolvable:$true] %s61
      %67 = dma.hbm_to_vmem [thread:$0]  %s3, 12288, %s62, [#allocation12], 256, 256, 16
    $region13: #{tpu_custom_call.1} parent=1 // pred_fallthru
      _
    // Predicated region
    $region14: #{tpu_custom_call.1} parent=1 // pred_check
      _
    $region15: #{tpu_custom_call.1} parent=1 // pred_check_branch
      %69 = sbr.rel (0) target = $region17
    $region16: #{tpu_custom_call.1} parent=1 // pred_region
      _
    $region17: #{tpu_custom_call.1} parent=1 // pred_fallthru
      _
    // Predicated region
    $region18: #{tpu_custom_call.1} parent=1 // pred_check
      _
    $region19: #{tpu_custom_call.1} parent=1 // pred_check_branch
      %71 = sbr.rel (0) target = $region21
    $region20: #{tpu_custom_call.1} parent=1 // pred_region
      %s73 = ssub.s32 16384, 16384
      %74 = vsyncadd [#allocation15], %s73
      %s75 = sshll.u32 [#allocation14], 4
      %s76 = int_to_ptr.vmem [resolvable:$true] %s75
      %81 = dma.hbm_to_vmem [thread:$0]  %s5, 16384, %s76, [#allocation15], 512, 512, 32
    $region21: #{tpu_custom_call.1} parent=1 // pred_fallthru
      _
    // Predicated region
    $region22: #{tpu_custom_call.1} parent=1 // pred_check
      _
    $region23: #{tpu_custom_call.1} parent=1 // pred_check_branch
      %83 = sbr.rel (0) target = $region25
    $region24: #{tpu_custom_call.1} parent=1 // pred_region
      _
    $region25: #{tpu_custom_call.1} parent=1 // pred_fallthru
      _
    // Predicated region
    $region26: #{tpu_custom_call.1} parent=1 // pred_check
      _
    $region27: #{tpu_custom_call.1} parent=1 // pred_check_branch
      %85 = sbr.rel (0) target = $region29
    $region28: #{tpu_custom_call.1} parent=1 // pred_region
      _
    $region29: #{tpu_custom_call.1} parent=1 // pred_fallthru
      _
    // Predicated region
    $region30: #{tpu_custom_call.1} parent=1 // pred_check
      _
    $region31: #{tpu_custom_call.1} parent=1 // pred_check_branch
      %87 = sbr.rel (0) target = $region33
    $region32: #{tpu_custom_call.1} parent=1 // pred_region
      _
    $region33: #{tpu_custom_call.1} parent=1 // pred_fallthru
      _
    // Predicated region
    $region34: #{tpu_custom_call.1} parent=1 // pred_check
      _
    $region35: #{tpu_custom_call.1} parent=1 // pred_check_branch
      %89 = sbr.rel (0) target = $region37
    $region36: #{tpu_custom_call.1} parent=1 // pred_region
      %90 = dma.done [#allocation9], 6144
    $region37: #{tpu_custom_call.1} parent=1 // pred_fallthru
      _
    // Predicated region
    $region38: #{tpu_custom_call.1} parent=1 // pred_check
      _
    $region39: #{tpu_custom_call.1} parent=1 // pred_check_branch
      %92 = sbr.rel (0) target = $region41
    $region40: #{tpu_custom_call.1} parent=1 // pred_region
      %93 = dma.done [#allocation12], 2048
    $region41: #{tpu_custom_call.1} parent=1 // pred_fallthru
      _
    // Predicated region
    $region42: #{tpu_custom_call.1} parent=1 // pred_check
      _
    $region43: #{tpu_custom_call.1} parent=1 // pred_check_branch
      %95 = sbr.rel (0) target = $region45
    $region44: #{tpu_custom_call.1} parent=1 // pred_region
      %96 = dma.done [#allocation12], 12288
    $region45: #{tpu_custom_call.1} parent=1 // pred_fallthru
      _
    // Predicated region
    $region46: #{tpu_custom_call.1} parent=1 // pred_check
      _
    $region47: #{tpu_custom_call.1} parent=1 // pred_check_branch
      %98 = sbr.rel (0) target = $region49
    $region48: #{tpu_custom_call.1} parent=1 // pred_region
      %99 = dma.done [#allocation15], 16384
    $region49: #{tpu_custom_call.1} parent=1 // pred_fallthru
      _
    %s100 = sadd.s32 0, 0
    %s101 = smul.u32 16, %s100
    %s102 = sadd.s32 0, 0
    %s103 = sld [smem:[#allocation6]]
    %p104 = scmp.eq.s32.totalorder 0, 0
    // Predicated region
    $region50: #{tpu_custom_call.1} parent=1 // pred_check
      %p105 = pneg %p104
    $region51: #{tpu_custom_call.1} parent=1 // pred_check_branch
      %107 = sbr.rel (%p105) target = $region53
    $region52: #{tpu_custom_call.1} parent=1 // pred_region
      %vm108 = vcmask 0
      %109 = vst.msk [vmem:[#allocation2] sm:$0x1] %vm108, -1e+30
      %110 = vst.msk [vmem:[#allocation3] sm:$0x1] %vm108, 0.0
      %v111 = vlaneseq
      %vm112 = vcmp.ge.s32.totalorder %v111, 0
      %vm113 = vcmp.lt.s32.totalorder %v111, 256
      %vm114 = vmand %vm112, %vm113
      %115 = vst.msk [vmem:[#allocation4] sm:$0x3] %vm114, 0.0
    $region53: #{tpu_custom_call.1} parent=1 // pred_fallthru
      _
    %v116 = vld [vmem:[#allocation8] sm:$0xff]
    %v117 = vld [vmem:[#allocation8 + $0x8] sm:$0xff]
    %v118 = vld [vmem:[#allocation8 + $0x10] sm:$0xff]
    %v119 = vld [vmem:[#allocation8 + $0x18] sm:$0xff]
    %v120 = vld [vmem:[#allocation8 + $0x20] sm:$0xff]
    %v121 = vld [vmem:[#allocation8 + $0x28] sm:$0xff]
    %v122 = vld [vmem:[#allocation8 + $0x30] sm:$0xff]
    %v123 = vld [vmem:[#allocation8 + $0x38] sm:$0xff]
    %v124 = vld [vmem:[#allocation8 + $0x40] sm:$0xff]
    %v125 = vld [vmem:[#allocation8 + $0x48] sm:$0xff]
    %v126 = vld [vmem:[#allocation8 + $0x50] sm:$0xff]
    %v127 = vld [vmem:[#allocation8 + $0x58] sm:$0xff]
    %v128 = vld [vmem:[#allocation8 + $0x60] sm:$0xff]
    %v129 = vld [vmem:[#allocation8 + $0x68] sm:$0xff]
    %v130 = vld [vmem:[#allocation8 + $0x70] sm:$0xff]
    %v131 = vld [vmem:[#allocation8 + $0x78] sm:$0xff]
    %v132 = vld [vmem:[#allocation8 + $0x80] sm:$0xff]
    %v133 = vld [vmem:[#allocation8 + $0x88] sm:$0xff]
    %v134 = vld [vmem:[#allocation8 + $0x90] sm:$0xff]
    %v135 = vld [vmem:[#allocation8 + $0x98] sm:$0xff]
    %v136 = vld [vmem:[#allocation8 + $0xa0] sm:$0xff]
    %v137 = vld [vmem:[#allocation8 + $0xa8] sm:$0xff]
    %v138 = vld [vmem:[#allocation8 + $0xb0] sm:$0xff]
    %v139 = vld [vmem:[#allocation8 + $0xb8] sm:$0xff]
    %v140 = vld [vmem:[#allocation8 + $0xc0] sm:$0xff]
    %v141 = vld [vmem:[#allocation8 + $0xc8] sm:$0xff]
    %v142 = vld [vmem:[#allocation8 + $0xd0] sm:$0xff]
    %v143 = vld [vmem:[#allocation8 + $0xd8] sm:$0xff]
    %v144 = vld [vmem:[#allocation8 + $0xe0] sm:$0xff]
    %v145 = vld [vmem:[#allocation8 + $0xe8] sm:$0xff]
    %v146 = vld [vmem:[#allocation8 + $0xf0] sm:$0xff]
    %v147 = vld [vmem:[#allocation8 + $0xf8] sm:$0xff]
    %v148 = vld [vmem:[#allocation8 + $0x100] sm:$0xff]
    %v149 = vld [vmem:[#allocation8 + $0x108] sm:$0xff]
    %v150 = vld [vmem:[#allocation8 + $0x110] sm:$0xff]
    %v151 = vld [vmem:[#allocation8 + $0x118] sm:$0xff]
    %v152 = vld [vmem:[#allocation8 + $0x120] sm:$0xff]
    %v153 = vld [vmem:[#allocation8 + $0x128] sm:$0xff]
    %v154 = vld [vmem:[#allocation8 + $0x130] sm:$0xff]
    %v155 = vld [vmem:[#allocation8 + $0x138] sm:$0xff]
    %v156 = vld [vmem:[#allocation8 + $0x140] sm:$0xff]
    %v157 = vld [vmem:[#allocation8 + $0x148] sm:$0xff]
    %v158 = vld [vmem:[#allocation8 + $0x150] sm:$0xff]
    %v159 = vld [vmem:[#allocation8 + $0x158] sm:$0xff]
    %v160 = vld [vmem:[#allocation8 + $0x160] sm:$0xff]
    %v161 = vld [vmem:[#allocation8 + $0x168] sm:$0xff]
    %v162 = vld [vmem:[#allocation8 + $0x170] sm:$0xff]
    %v163 = vld [vmem:[#allocation8 + $0x178] sm:$0xff]
    %v164 = vld [vmem:[#allocation13] sm:$0xff]
    %v165 = vld [vmem:[#allocation13 + $0x8] sm:$0xff]
    %v166 = vld [vmem:[#allocation13 + $0x10] sm:$0xff]
    %v167 = vld [vmem:[#allocation13 + $0x18] sm:$0xff]
    %v168 = vld [vmem:[#allocation13 + $0x20] sm:$0xff]
    %v169 = vld [vmem:[#allocation13 + $0x28] sm:$0xff]
    %v170 = vld [vmem:[#allocation13 + $0x30] sm:$0xff]
    %v171 = vld [vmem:[#allocation13 + $0x38] sm:$0xff]
    %v172 = vld [vmem:[#allocation13 + $0x40] sm:$0xff]
    %v173 = vld [vmem:[#allocation13 + $0x48] sm:$0xff]
    %v174 = vld [vmem:[#allocation13 + $0x50] sm:$0xff]
    %v175 = vld [vmem:[#allocation13 + $0x58] sm:$0xff]
    %v176 = vld [vmem:[#allocation13 + $0x60] sm:$0xff]
    %v177 = vld [vmem:[#allocation13 + $0x68] sm:$0xff]
    %v178 = vld [vmem:[#allocation13 + $0x70] sm:$0xff]
    %v179 = vld [vmem:[#allocation13 + $0x78] sm:$0xff]
    %v180 = vld [vmem:[#allocation13 + $0x80] sm:$0xff]
    %v181 = vld [vmem:[#allocation13 + $0x88] sm:$0xff]
    %v182 = vld [vmem:[#allocation13 + $0x90] sm:$0xff]
    %v183 = vld [vmem:[#allocation13 + $0x98] sm:$0xff]
    %v184 = vld [vmem:[#allocation13 + $0xa0] sm:$0xff]
    %v185 = vld [vmem:[#allocation13 + $0xa8] sm:$0xff]
    %v186 = vld [vmem:[#allocation13 + $0xb0] sm:$0xff]
    %v187 = vld [vmem:[#allocation13 + $0xb8] sm:$0xff]
    %v188 = vld [vmem:[#allocation13 + $0xc0] sm:$0xff]
    %v189 = vld [vmem:[#allocation13 + $0xc8] sm:$0xff]
    %v190 = vld [vmem:[#allocation13 + $0xd0] sm:$0xff]
    %v191 = vld [vmem:[#allocation13 + $0xd8] sm:$0xff]
    %v192 = vld [vmem:[#allocation13 + $0xe0] sm:$0xff]
    %v193 = vld [vmem:[#allocation13 + $0xe8] sm:$0xff]
    %v194 = vld [vmem:[#allocation13 + $0xf0] sm:$0xff]
    %v195 = vld [vmem:[#allocation13 + $0xf8] sm:$0xff]
    %v196 = vld [vmem:[#allocation13 + $0x100] sm:$0xff]
    %v197 = vld [vmem:[#allocation13 + $0x108] sm:$0xff]
    %v198 = vld [vmem:[#allocation13 + $0x110] sm:$0xff]
    %v199 = vld [vmem:[#allocation13 + $0x118] sm:$0xff]
    %v200 = vld [vmem:[#allocation13 + $0x120] sm:$0xff]
    %v201 = vld [vmem:[#allocation13 + $0x128] sm:$0xff]
    %v202 = vld [vmem:[#allocation13 + $0x130] sm:$0xff]
    %v203 = vld [vmem:[#allocation13 + $0x138] sm:$0xff]
    %v204 = vld [vmem:[#allocation13 + $0x140] sm:$0xff]
    %v205 = vld [vmem:[#allocation13 + $0x148] sm:$0xff]
    %v206 = vld [vmem:[#allocation13 + $0x150] sm:$0xff]
    %v207 = vld [vmem:[#allocation13 + $0x158] sm:$0xff]
    %v208 = vld [vmem:[#allocation13 + $0x160] sm:$0xff]
    %v209 = vld [vmem:[#allocation13 + $0x168] sm:$0xff]
    %v210 = vld [vmem:[#allocation13 + $0x170] sm:$0xff]
    %v211 = vld [vmem:[#allocation13 + $0x178] sm:$0xff]
    %v212 = vld [vmem:[#allocation13 + $0x180] sm:$0xff]
    %v213 = vld [vmem:[#allocation13 + $0x188] sm:$0xff]
    %v214 = vld [vmem:[#allocation13 + $0x190] sm:$0xff]
    %v215 = vld [vmem:[#allocation13 + $0x198] sm:$0xff]
    %v216 = vld [vmem:[#allocation13 + $0x1a0] sm:$0xff]
    %v217 = vld [vmem:[#allocation13 + $0x1a8] sm:$0xff]
    %v218 = vld [vmem:[#allocation13 + $0x1b0] sm:$0xff]
    %v219 = vld [vmem:[#allocation13 + $0x1b8] sm:$0xff]
    %v220 = vld [vmem:[#allocation13 + $0x1c0] sm:$0xff]
    %v221 = vld [vmem:[#allocation13 + $0x1c8] sm:$0xff]
    %v222 = vld [vmem:[#allocation13 + $0x1d0] sm:$0xff]
    %v223 = vld [vmem:[#allocation13 + $0x1d8] sm:$0xff]
    %v224 = vld [vmem:[#allocation13 + $0x1e0] sm:$0xff]
    %v225 = vld [vmem:[#allocation13 + $0x1e8] sm:$0xff]
    %v226 = vld [vmem:[#allocation13 + $0x1f0] sm:$0xff]
    %v227 = vld [vmem:[#allocation13 + $0x1f8] sm:$0xff]
    %v228 = vld [vmem:[#allocation13 + $0x200] sm:$0xff]
    %v229 = vld [vmem:[#allocation13 + $0x208] sm:$0xff]
    %v230 = vld [vmem:[#allocation13 + $0x210] sm:$0xff]
    %v231 = vld [vmem:[#allocation13 + $0x218] sm:$0xff]
    %v232 = vld [vmem:[#allocation13 + $0x220] sm:$0xff]
    %v233 = vld [vmem:[#allocation13 + $0x228] sm:$0xff]
    %v234 = vld [vmem:[#allocation13 + $0x230] sm:$0xff]
    %v235 = vld [vmem:[#allocation13 + $0x238] sm:$0xff]
    %v236 = vld [vmem:[#allocation13 + $0x240] sm:$0xff]
    %v237 = vld [vmem:[#allocation13 + $0x248] sm:$0xff]
    %v238 = vld [vmem:[#allocation13 + $0x250] sm:$0xff]
    %v239 = vld [vmem:[#allocation13 + $0x258] sm:$0xff]
    %v240 = vld [vmem:[#allocation13 + $0x260] sm:$0xff]
    %v241 = vld [vmem:[#allocation13 + $0x268] sm:$0xff]
    %v242 = vld [vmem:[#allocation13 + $0x270] sm:$0xff]
    %v243 = vld [vmem:[#allocation13 + $0x278] sm:$0xff]
    %v244 = vld [vmem:[#allocation13 + $0x280] sm:$0xff]
    %v245 = vld [vmem:[#allocation13 + $0x288] sm:$0xff]
    %v246 = vld [vmem:[#allocation13 + $0x290] sm:$0xff]
    %v247 = vld [vmem:[#allocation13 + $0x298] sm:$0xff]
    %v248 = vld [vmem:[#allocation13 + $0x2a0] sm:$0xff]
    %v249 = vld [vmem:[#allocation13 + $0x2a8] sm:$0xff]
    %v250 = vld [vmem:[#allocation13 + $0x2b0] sm:$0xff]
    %v251 = vld [vmem:[#allocation13 + $0x2b8] sm:$0xff]
    %v252 = vld [vmem:[#allocation13 + $0x2c0] sm:$0xff]
    %v253 = vld [vmem:[#allocation13 + $0x2c8] sm:$0xff]
    %v254 = vld [vmem:[#allocation13 + $0x2d0] sm:$0xff]
    %v255 = vld [vmem:[#allocation13 + $0x2d8] sm:$0xff]
    %v256 = vld [vmem:[#allocation13 + $0x2e0] sm:$0xff]
    %v257 = vld [vmem:[#allocation13 + $0x2e8] sm:$0xff]
    %v258 = vld [vmem:[#allocation13 + $0x2f0] sm:$0xff]
    %v259 = vld [vmem:[#allocation13 + $0x2f8] sm:$0xff]
    %v260 = vld [vmem:[%s4] sm:$0x3]
    %v262 = vlaneseq
    %v263 = vshrl.u32 %v262, 7
    %v264 = vsub.s32 0, %v263
    %v265 = vrot.slane %v260, %v264
    %v266 = vlaneseq
    %v267 = vshrl.u32 %v266, 7
    %v268 = vsub.s32 1, %v267
    %v269 = vrot.slane %v260, %v268
    %272 = vmatprep.subr.mxu0 %v165
    %273 = vmatpush1.msra.mxu0 %v164
    %274 = vmatprep.subr.mxu0 %v167
    %275 = vmatpush1.msra.mxu0 %v166
    %276 = vmatprep.subr.mxu0 %v169
    %277 = vmatpush1.msra.mxu0 %v168
    %278 = vmatprep.subr.mxu0 %v171
    %279 = vmatpush1.msra.mxu0 %v170
    %280 = vmatprep.subr.mxu0 %v173
    %281 = vmatpush1.msra.mxu0 %v172
    %282 = vmatprep.subr.mxu0 %v175
    %283 = vmatpush1.msra.mxu0 %v174
    %284 = vmatprep.subr.mxu0 %v177
    %285 = vmatpush1.msra.mxu0 %v176
    %286 = vmatprep.subr.mxu0 %v179
    %287 = vmatpush1.msra.mxu0 %v178
    %288 = vmatprep.subr.mxu0 %v181
    %289 = vmatpush1.msra.mxu0 %v180
    %290 = vmatprep.subr.mxu0 %v183
    %291 = vmatpush1.msra.mxu0 %v182
    %292 = vmatprep.subr.mxu0 %v185
    %293 = vmatpush1.msra.mxu0 %v184
    %294 = vmatprep.subr.mxu0 %v187
    %295 = vmatpush1.msra.mxu0 %v186
    %296 = vmatprep.subr.mxu0 %v189
    %297 = vmatpush1.msra.mxu0 %v188
    %298 = vmatprep.subr.mxu0 %v191
    %299 = vmatpush1.msra.mxu0 %v190
    %300 = vmatprep.subr.mxu0 %v193
    %301 = vmatpush1.msra.mxu0 %v192
    %302 = vmatprep.subr.mxu0 %v195
    %303 = vmatpush1.msra.mxu0 %v194
    %304 = vmatprep.subr.mxu0 %v197
    %305 = vmatpush1.msra.mxu0 %v196
    %306 = vmatprep.subr.mxu0 %v199
    %307 = vmatpush1.msra.mxu0 %v198
    %308 = vmatprep.subr.mxu0 %v201
    %309 = vmatpush1.msra.mxu0 %v200
    %310 = vmatprep.subr.mxu0 %v203
    %311 = vmatpush1.msra.mxu0 %v202
    %312 = vmatprep.subr.mxu0 %v205
    %313 = vmatpush1.msra.mxu0 %v204
    %314 = vmatprep.subr.mxu0 %v207
    %315 = vmatpush1.msra.mxu0 %v206
    %316 = vmatprep.subr.mxu0 %v209
    %317 = vmatpush1.msra.mxu0 %v208
    %318 = vmatprep.subr.mxu0 %v211
    %319 = vmatpush1.msra.mxu0 %v210
    %320 = vmatprep.subr.mxu0 %v213
    %321 = vmatpush1.msra.mxu0 %v212
    %322 = vmatprep.subr.mxu0 %v215
    %323 = vmatpush1.msra.mxu0 %v214
    %324 = vmatprep.subr.mxu0 %v217
    %325 = vmatpush1.msra.mxu0 %v216
    %326 = vmatprep.subr.mxu0 %v219
    %327 = vmatpush1.msra.mxu0 %v218
    %328 = vmatprep.subr.mxu0 %v221
    %329 = vmatpush1.msra.mxu0 %v220
    %330 = vmatprep.subr.mxu0 %v223
    %331 = vmatpush1.msra.mxu0 %v222
    %332 = vmatprep.subr.mxu0 %v225
    %333 = vmatpush1.msra.mxu0 %v224
    %334 = vmatprep.subr.mxu0 %v227
    %335 = vmatpush1.msra.mxu0 %v226
    %336 = vmatprep.mubr.f32.mxu0 %v117
    %337 = vmatmul.mubr.f32.gmra.mrb[0].mxu0 %v116
    %v338 = vpop.f32.mrb[0].mxu0
    %v339 = vadd.f32 %v265, %v338
    %v340 = vpop.f32.mrb[0].mxu0
    %v341 = vadd.f32 %v269, %v340
    %342 = vmatprep.mubr.f32.mxu0 %v120
    %343 = vmatmul.mubr.f32.gmra.mrb[0].mxu0 %v119
    %v344 = vpop.f32.mrb[0].mxu0
    %v345 = vadd.f32 %v265, %v344
    %v346 = vpop.f32.mrb[0].mxu0
    %v347 = vadd.f32 %v269, %v346
    %348 = vmatprep.mubr.f32.mxu0 %v123
    %349 = vmatmul.mubr.f32.gmra.mrb[0].mxu0 %v122
    %v350 = vpop.f32.mrb[0].mxu0
    %v351 = vadd.f32 %v265, %v350
    %v352 = vpop.f32.mrb[0].mxu0
    %v353 = vadd.f32 %v269, %v352
    %354 = vmatprep.mubr.f32.mxu0 %v126
    %355 = vmatmul.mubr.f32.gmra.mrb[0].mxu0 %v125
    %v356 = vpop.f32.mrb[0].mxu0
    %v357 = vadd.f32 %v265, %v356
    %v358 = vpop.f32.mrb[0].mxu0
    %v359 = vadd.f32 %v269, %v358
    %360 = vmatprep.mubr.f32.mxu0 %v129
    %361 = vmatmul.mubr.f32.gmra.mrb[0].mxu0 %v128
    %v362 = vpop.f32.mrb[0].mxu0
    %v363 = vadd.f32 %v265, %v362
    %v364 = vpop.f32.mrb[0].mxu0
    %v365 = vadd.f32 %v269, %v364
    %366 = vmatprep.mubr.f32.mxu0 %v132
    %367 = vmatmul.mubr.f32.gmra.mrb[0].mxu0 %v131
    %v368 = vpop.f32.mrb[0].mxu0
    %v369 = vadd.f32 %v265, %v368
    %v370 = vpop.f32.mrb[0].mxu0
    %v371 = vadd.f32 %v269, %v370
    %372 = vmatprep.mubr.f32.mxu0 %v135
    %373 = vmatmul.mubr.f32.gmra.mrb[0].mxu0 %v134
    %v374 = vpop.f32.mrb[0].mxu0
    %v375 = vadd.f32 %v265, %v374
    %v376 = vpop.f32.mrb[0].mxu0
    %v377 = vadd.f32 %v269, %v376
    %378 = vmatprep.mubr.f32.mxu0 %v138
    %379 = vmatmul.mubr.f32.gmra.mrb[0].mxu0 %v137
    %v380 = vpop.f32.mrb[0].mxu0
    %v381 = vadd.f32 %v265, %v380
    %v382 = vpop.f32.mrb[0].mxu0
    %v383 = vadd.f32 %v269, %v382
    %384 = vmatprep.mubr.f32.mxu0 %v141
    %385 = vmatmul.mubr.f32.gmra.mrb[0].mxu0 %v140
    %v386 = vpop.f32.mrb[0].mxu0
    %v387 = vadd.f32 %v265, %v386
    %v388 = vpop.f32.mrb[0].mxu0
    %v389 = vadd.f32 %v269, %v388
    %390 = vmatprep.mubr.f32.mxu0 %v144
    %391 = vmatmul.mubr.f32.gmra.mrb[0].mxu0 %v143
    %v392 = vpop.f32.mrb[0].mxu0
    %v393 = vadd.f32 %v265, %v392
    %v394 = vpop.f32.mrb[0].mxu0
    %v395 = vadd.f32 %v269, %v394
    %396 = vmatprep.mubr.f32.mxu0 %v147
    %397 = vmatmul.mubr.f32.gmra.mrb[0].mxu0 %v146
    %v398 = vpop.f32.mrb[0].mxu0
    %v399 = vadd.f32 %v265, %v398
    %v400 = vpop.f32.mrb[0].mxu0
    %v401 = vadd.f32 %v269, %v400
    %402 = vmatprep.mubr.f32.mxu0 %v150
    %403 = vmatmul.mubr.f32.gmra.mrb[0].mxu0 %v149
    %v404 = vpop.f32.mrb[0].mxu0
    %v405 = vadd.f32 %v265, %v404
    %v406 = vpop.f32.mrb[0].mxu0
    %v407 = vadd.f32 %v269, %v406
    %408 = vmatprep.mubr.f32.mxu0 %v153
    %409 = vmatmul.mubr.f32.gmra.mrb[0].mxu0 %v152
    %v410 = vpop.f32.mrb[0].mxu0
    %v411 = vadd.f32 %v265, %v410
    %v412 = vpop.f32.mrb[0].mxu0
    %v413 = vadd.f32 %v269, %v412
    %414 = vmatprep.mubr.f32.mxu0 %v156
    %415 = vmatmul.mubr.f32.gmra.mrb[0].mxu0 %v155
    %v416 = vpop.f32.mrb[0].mxu0
    %v417 = vadd.f32 %v265, %v416
    %v418 = vpop.f32.mrb[0].mxu0
    %v419 = vadd.f32 %v269, %v418
    %420 = vmatprep.mubr.f32.mxu0 %v159
    %421 = vmatmul.mubr.f32.gmra.mrb[0].mxu0 %v158
    %v422 = vpop.f32.mrb[0].mxu0
    %v423 = vadd.f32 %v265, %v422
    %v424 = vpop.f32.mrb[0].mxu0
    %v425 = vadd.f32 %v269, %v424
    %426 = vmatprep.mubr.f32.mxu0 %v162
    %427 = vmatmul.mubr.f32.gmra.mrb[0].mxu0 %v161
    %v428 = vpop.f32.mrb[0].mxu0
    %v429 = vadd.f32 %v265, %v428
    %v430 = vpop.f32.mrb[0].mxu0
    %v431 = vadd.f32 %v269, %v430
    %432 = vdwg.mxu0
    %433 = vmatprep.subr.mxu0 %v229
    %434 = vmatpush1.msra.mxu0 %v228
    %435 = vmatprep.subr.mxu0 %v231
    %436 = vmatpush1.msra.mxu0 %v230
    %437 = vmatprep.subr.mxu0 %v233
    %438 = vmatpush1.msra.mxu0 %v232
    %439 = vmatprep.subr.mxu0 %v235
    %440 = vmatpush1.msra.mxu0 %v234
    %441 = vmatprep.subr.mxu0 %v237
    %442 = vmatpush1.msra.mxu0 %v236
    %443 = vmatprep.subr.mxu0 %v239
    %444 = vmatpush1.msra.mxu0 %v238
    %445 = vmatprep.subr.mxu0 %v241
    %446 = vmatpush1.msra.mxu0 %v240
    %447 = vmatprep.subr.mxu0 %v243
    %448 = vmatpush1.msra.mxu0 %v242
    %449 = vmatprep.subr.mxu0 %v245
    %450 = vmatpush1.msra.mxu0 %v244
    %451 = vmatprep.subr.mxu0 %v247
    %452 = vmatpush1.msra.mxu0 %v246
    %453 = vmatprep.subr.mxu0 %v249
    %454 = vmatpush1.msra.mxu0 %v248
    %455 = vmatprep.subr.mxu0 %v251
    %456 = vmatpush1.msra.mxu0 %v250
    %457 = vmatprep.subr.mxu0 %v253
    %458 = vmatpush1.msra.mxu0 %v252
    %459 = vmatprep.subr.mxu0 %v255
    %460 = vmatpush1.msra.mxu0 %v254
    %461 = vmatprep.subr.mxu0 %v257
    %462 = vmatpush1.msra.mxu0 %v256
    %463 = vmatprep.subr.mxu0 %v259
    %464 = vmatpush1.msra.mxu0 %v258
    %465 = vmatprep.subr.mxu0 0.0
    %466 = vmatpush1.msra.mxu0 0.0
    %467 = vmatprep.subr.mxu0 0.0
    %468 = vmatpush1.msra.mxu0 0.0
    %469 = vmatprep.subr.mxu0 0.0
    %470 = vmatpush1.msra.mxu0 0.0
    %471 = vmatprep.subr.mxu0 0.0
    %472 = vmatpush1.msra.mxu0 0.0
    %473 = vmatprep.subr.mxu0 0.0
    %474 = vmatpush1.msra.mxu0 0.0
    %475 = vmatprep.subr.mxu0 0.0
    %476 = vmatpush1.msra.mxu0 0.0
    %477 = vmatprep.subr.mxu0 0.0
    %478 = vmatpush1.msra.mxu0 0.0
    %479 = vmatprep.subr.mxu0 0.0
    %480 = vmatpush1.msra.mxu0 0.0
    %481 = vmatprep.subr.mxu0 0.0
    %482 = vmatpush1.msra.mxu0 0.0
    %483 = vmatprep.subr.mxu0 0.0
    %484 = vmatpush1.msra.mxu0 0.0
    %485 = vmatprep.subr.mxu0 0.0
    %486 = vmatpush1.msra.mxu0 0.0
    %487 = vmatprep.subr.mxu0 0.0
    %488 = vmatpush1.msra.mxu0 0.0
    %489 = vmatprep.subr.mxu0 0.0
    %490 = vmatpush1.msra.mxu0 0.0
    %491 = vmatprep.subr.mxu0 0.0
    %492 = vmatpush1.msra.mxu0 0.0
    %493 = vmatprep.subr.mxu0 0.0
    %494 = vmatpush1.msra.mxu0 0.0
    %495 = vmatprep.subr.mxu0 0.0
    %496 = vmatpush1.msra.mxu0 0.0
    %497 = vmatprep.mubr.f32.mxu0 0.0
    %498 = vmatmul.mubr.f32.gmra.mrb[0].mxu0 %v118
    %v499 = vpop.f32.mrb[0].mxu0
    %v500 = vadd.f32 %v339, %v499
    %v501 = vpop.f32.mrb[0].mxu0
    %v502 = vadd.f32 %v341, %v501
    %503 = vmatprep.mubr.f32.mxu0 0.0
    %504 = vmatmul.mubr.f32.gmra.mrb[0].mxu0 %v121
    %v505 = vpop.f32.mrb[0].mxu0
    %v506 = vadd.f32 %v345, %v505
    %v507 = vpop.f32.mrb[0].mxu0
    %v508 = vadd.f32 %v347, %v507
    %509 = vmatprep.mubr.f32.mxu0 0.0
    %510 = vmatmul.mubr.f32.gmra.mrb[0].mxu0 %v124
    %v511 = vpop.f32.mrb[0].mxu0
    %v512 = vadd.f32 %v351, %v511
    %v513 = vpop.f32.mrb[0].mxu0
    %v514 = vadd.f32 %v353, %v513
    %515 = vmatprep.mubr.f32.mxu0 0.0
    %516 = vmatmul.mubr.f32.gmra.mrb[0].mxu0 %v127
    %v517 = vpop.f32.mrb[0].mxu0
    %v518 = vadd.f32 %v357, %v517
    %v519 = vpop.f32.mrb[0].mxu0
    %v520 = vadd.f32 %v359, %v519
    %521 = vmatprep.mubr.f32.mxu0 0.0
    %522 = vmatmul.mubr.f32.gmra.mrb[0].mxu0 %v130
    %v523 = vpop.f32.mrb[0].mxu0
    %v524 = vadd.f32 %v363, %v523
    %v525 = vpop.f32.mrb[0].mxu0
    %v526 = vadd.f32 %v365, %v525
    %527 = vmatprep.mubr.f32.mxu0 0.0
    %528 = vmatmul.mubr.f32.gmra.mrb[0].mxu0 %v133
    %v529 = vpop.f32.mrb[0].mxu0
    %v530 = vadd.f32 %v369, %v529
    %v531 = vpop.f32.mrb[0].mxu0
    %v532 = vadd.f32 %v371, %v531
    %533 = vmatprep.mubr.f32.mxu0 0.0
    %534 = vmatmul.mubr.f32.gmra.mrb[0].mxu0 %v136
    %v535 = vpop.f32.mrb[0].mxu0
    %v536 = vadd.f32 %v375, %v535
    %v537 = vpop.f32.mrb[0].mxu0
    %v538 = vadd.f32 %v377, %v537
    %539 = vmatprep.mubr.f32.mxu0 0.0
    %540 = vmatmul.mubr.f32.gmra.mrb[0].mxu0 %v139
    %v541 = vpop.f32.mrb[0].mxu0
    %v542 = vadd.f32 %v381, %v541
    %v543 = vpop.f32.mrb[0].mxu0
    %v544 = vadd.f32 %v383, %v543
    %545 = vmatprep.mubr.f32.mxu0 0.0
    %546 = vmatmul.mubr.f32.gmra.mrb[0].mxu0 %v142
    %v547 = vpop.f32.mrb[0].mxu0
    %v548 = vadd.f32 %v387, %v547
    %v549 = vpop.f32.mrb[0].mxu0
    %v550 = vadd.f32 %v389, %v549
    %551 = vmatprep.mubr.f32.mxu0 0.0
    %552 = vmatmul.mubr.f32.gmra.mrb[0].mxu0 %v145
    %v553 = vpop.f32.mrb[0].mxu0
    %v554 = vadd.f32 %v393, %v553
    %v555 = vpop.f32.mrb[0].mxu0
    %v556 = vadd.f32 %v395, %v555
    %557 = vmatprep.mubr.f32.mxu0 0.0
    %558 = vmatmul.mubr.f32.gmra.mrb[0].mxu0 %v148
    %v559 = vpop.f32.mrb[0].mxu0
    %v560 = vadd.f32 %v399, %v559
    %v561 = vpop.f32.mrb[0].mxu0
    %v562 = vadd.f32 %v401, %v561
    %563 = vmatprep.mubr.f32.mxu0 0.0
    %564 = vmatmul.mubr.f32.gmra.mrb[0].mxu0 %v151
    %v565 = vpop.f32.mrb[0].mxu0
    %v566 = vadd.f32 %v405, %v565
    %v567 = vpop.f32.mrb[0].mxu0
    %v568 = vadd.f32 %v407, %v567
    %569 = vmatprep.mubr.f32.mxu0 0.0
    %570 = vmatmul.mubr.f32.gmra.mrb[0].mxu0 %v154
    %v571 = vpop.f32.mrb[0].mxu0
    %v572 = vadd.f32 %v411, %v571
    %v573 = vpop.f32.mrb[0].mxu0
    %v574 = vadd.f32 %v413, %v573
    %575 = vmatprep.mubr.f32.mxu0 0.0
    %576 = vmatmul.mubr.f32.gmra.mrb[0].mxu0 %v157
    %v577 = vpop.f32.mrb[0].mxu0
    %v578 = vadd.f32 %v417, %v577
    %v579 = vpop.f32.mrb[0].mxu0
    %v580 = vadd.f32 %v419, %v579
    %581 = vmatprep.mubr.f32.mxu0 0.0
    %582 = vmatmul.mubr.f32.gmra.mrb[0].mxu0 %v160
    %v583 = vpop.f32.mrb[0].mxu0
    %v584 = vadd.f32 %v423, %v583
    %v585 = vpop.f32.mrb[0].mxu0
    %v586 = vadd.f32 %v425, %v585
    %587 = vmatprep.mubr.f32.mxu0 0.0
    %588 = vmatmul.mubr.f32.gmra.mrb[0].mxu0 %v163
    %v589 = vpop.f32.mrb[0].mxu0
    %v590 = vadd.f32 %v429, %v589
    %v591 = vpop.f32.mrb[0].mxu0
    %v592 = vadd.f32 %v431, %v591
    %593 = vdwg.mxu0
    %v594 = vmax.f32 %v500, 0.0
    %v595 = vmax.f32 %v502, 0.0
    %v596 = vmax.f32 %v506, 0.0
    %v597 = vmax.f32 %v508, 0.0
    %v598 = vmax.f32 %v512, 0.0
    %v599 = vmax.f32 %v514, 0.0
    %v600 = vmax.f32 %v518, 0.0
    %v601 = vmax.f32 %v520, 0.0
    %v602 = vmax.f32 %v524, 0.0
    %v603 = vmax.f32 %v526, 0.0
    %v604 = vmax.f32 %v530, 0.0
    %v605 = vmax.f32 %v532, 0.0
    %v606 = vmax.f32 %v536, 0.0
    %v607 = vmax.f32 %v538, 0.0
    %v608 = vmax.f32 %v542, 0.0
    %v609 = vmax.f32 %v544, 0.0
    %v610 = vmax.f32 %v548, 0.0
    %v611 = vmax.f32 %v550, 0.0
    %v612 = vmax.f32 %v554, 0.0
    %v613 = vmax.f32 %v556, 0.0
    %v614 = vmax.f32 %v560, 0.0
    %v615 = vmax.f32 %v562, 0.0
    %v616 = vmax.f32 %v566, 0.0
    %v617 = vmax.f32 %v568, 0.0
    %v618 = vmax.f32 %v572, 0.0
    %v619 = vmax.f32 %v574, 0.0
    %v620 = vmax.f32 %v578, 0.0
    %v621 = vmax.f32 %v580, 0.0
    %v622 = vmax.f32 %v584, 0.0
    %v623 = vmax.f32 %v586, 0.0
    %v624 = vmax.f32 %v590, 0.0
    %v625 = vmax.f32 %v592, 0.0
    %v626 = vld [vmem:[#allocation14] sm:$0xff]
    %v627 = vld [vmem:[#allocation14 + $0x8] sm:$0xff]
    %v628 = vld [vmem:[#allocation14 + $0x10] sm:$0xff]
    %v629 = vld [vmem:[#allocation14 + $0x18] sm:$0xff]
    %v630 = vld [vmem:[#allocation14 + $0x20] sm:$0xff]
    %v631 = vld [vmem:[#allocation14 + $0x28] sm:$0xff]
    %v632 = vld [vmem:[#allocation14 + $0x30] sm:$0xff]
    %v633 = vld [vmem:[#allocation14 + $0x38] sm:$0xff]
    %v634 = vld [vmem:[#allocation14 + $0x40] sm:$0xff]
    %v635 = vld [vmem:[#allocation14 + $0x48] sm:$0xff]
    %v636 = vld [vmem:[#allocation14 + $0x50] sm:$0xff]
    %v637 = vld [vmem:[#allocation14 + $0x58] sm:$0xff]
    %v638 = vld [vmem:[#allocation14 + $0x60] sm:$0xff]
    %v639 = vld [vmem:[#allocation14 + $0x68] sm:$0xff]
    %v640 = vld [vmem:[#allocation14 + $0x70] sm:$0xff]
    %v641 = vld [vmem:[#allocation14 + $0x78] sm:$0xff]
    %v642 = vld [vmem:[#allocation14 + $0x80] sm:$0xff]
    %v643 = vld [vmem:[#allocation14 + $0x88] sm:$0xff]
    %v644 = vld [vmem:[#allocation14 + $0x90] sm:$0xff]
    %v645 = vld [vmem:[#allocation14 + $0x98] sm:$0xff]
    %v646 = vld [vmem:[#allocation14 + $0xa0] sm:$0xff]
    %v647 = vld [vmem:[#allocation14 + $0xa8] sm:$0xff]
    %v648 = vld [vmem:[#allocation14 + $0xb0] sm:$0xff]
    %v649 = vld [vmem:[#allocation14 + $0xb8] sm:$0xff]
    %v650 = vld [vmem:[#allocation14 + $0xc0] sm:$0xff]
    %v651 = vld [vmem:[#allocation14 + $0xc8] sm:$0xff]
    %v652 = vld [vmem:[#allocation14 + $0xd0] sm:$0xff]
    %v653 = vld [vmem:[#allocation14 + $0xd8] sm:$0xff]
    %v654 = vld [vmem:[#allocation14 + $0xe0] sm:$0xff]
    %v655 = vld [vmem:[#allocation14 + $0xe8] sm:$0xff]
    %v656 = vld [vmem:[#allocation14 + $0xf0] sm:$0xff]
    %v657 = vld [vmem:[#allocation14 + $0xf8] sm:$0xff]
    %v658 = vld [vmem:[#allocation14 + $0x100] sm:$0xff]
    %v659 = vld [vmem:[#allocation14 + $0x108] sm:$0xff]
    %v660 = vld [vmem:[#allocation14 + $0x110] sm:$0xff]
    %v661 = vld [vmem:[#allocation14 + $0x118] sm:$0xff]
    %v662 = vld [vmem:[#allocation14 + $0x120] sm:$0xff]
    %v663 = vld [vmem:[#allocation14 + $0x128] sm:$0xff]
    %v664 = vld [vmem:[#allocation14 + $0x130] sm:$0xff]
    %v665 = vld [vmem:[#allocation14 + $0x138] sm:$0xff]
    %v666 = vld [vmem:[#allocation14 + $0x140] sm:$0xff]
    %v667 = vld [vmem:[#allocation14 + $0x148] sm:$0xff]
    %v668 = vld [vmem:[#allocation14 + $0x150] sm:$0xff]
    %v669 = vld [vmem:[#allocation14 + $0x158] sm:$0xff]
    %v670 = vld [vmem:[#allocation14 + $0x160] sm:$0xff]
    %v671 = vld [vmem:[#allocation14 + $0x168] sm:$0xff]
    %v672 = vld [vmem:[#allocation14 + $0x170] sm:$0xff]
    %v673 = vld [vmem:[#allocation14 + $0x178] sm:$0xff]
    %v674 = vld [vmem:[#allocation14 + $0x180] sm:$0xff]
    %v675 = vld [vmem:[#allocation14 + $0x188] sm:$0xff]
    %v676 = vld [vmem:[#allocation14 + $0x190] sm:$0xff]
    %v677 = vld [vmem:[#allocation14 + $0x198] sm:$0xff]
    %v678 = vld [vmem:[#allocation14 + $0x1a0] sm:$0xff]
    %v679 = vld [vmem:[#allocation14 + $0x1a8] sm:$0xff]
    %v680 = vld [vmem:[#allocation14 + $0x1b0] sm:$0xff]
    %v681 = vld [vmem:[#allocation14 + $0x1b8] sm:$0xff]
    %v682 = vld [vmem:[#allocation14 + $0x1c0] sm:$0xff]
    %v683 = vld [vmem:[#allocation14 + $0x1c8] sm:$0xff]
    %v684 = vld [vmem:[#allocation14 + $0x1d0] sm:$0xff]
    %v685 = vld [vmem:[#allocation14 + $0x1d8] sm:$0xff]
    %v686 = vld [vmem:[#allocation14 + $0x1e0] sm:$0xff]
    %v687 = vld [vmem:[#allocation14 + $0x1e8] sm:$0xff]
    %v688 = vld [vmem:[#allocation14 + $0x1f0] sm:$0xff]
    %v689 = vld [vmem:[#allocation14 + $0x1f8] sm:$0xff]
    %v690 = vld [vmem:[#allocation14 + $0x200] sm:$0xff]
    %v691 = vld [vmem:[#allocation14 + $0x208] sm:$0xff]
    %v692 = vld [vmem:[#allocation14 + $0x210] sm:$0xff]
    %v693 = vld [vmem:[#allocation14 + $0x218] sm:$0xff]
    %v694 = vld [vmem:[#allocation14 + $0x220] sm:$0xff]
    %v695 = vld [vmem:[#allocation14 + $0x228] sm:$0xff]
    %v696 = vld [vmem:[#allocation14 + $0x230] sm:$0xff]
    %v697 = vld [vmem:[#allocation14 + $0x238] sm:$0xff]
    %v698 = vld [vmem:[#allocation14 + $0x240] sm:$0xff]
    %v699 = vld [vmem:[#allocation14 + $0x248] sm:$0xff]
    %v700 = vld [vmem:[#allocation14 + $0x250] sm:$0xff]
    %v701 = vld [vmem:[#allocation14 + $0x258] sm:$0xff]
    %v702 = vld [vmem:[#allocation14 + $0x260] sm:$0xff]
    %v703 = vld [vmem:[#allocation14 + $0x268] sm:$0xff]
    %v704 = vld [vmem:[#allocation14 + $0x270] sm:$0xff]
    %v705 = vld [vmem:[#allocation14 + $0x278] sm:$0xff]
    %v706 = vld [vmem:[#allocation14 + $0x280] sm:$0xff]
    %v707 = vld [vmem:[#allocation14 + $0x288] sm:$0xff]
    %v708 = vld [vmem:[#allocation14 + $0x290] sm:$0xff]
    %v709 = vld [vmem:[#allocation14 + $0x298] sm:$0xff]
    %v710 = vld [vmem:[#allocation14 + $0x2a0] sm:$0xff]
    %v711 = vld [vmem:[#allocation14 + $0x2a8] sm:$0xff]
    %v712 = vld [vmem:[#allocation14 + $0x2b0] sm:$0xff]
    %v713 = vld [vmem:[#allocation14 + $0x2b8] sm:$0xff]
    %v714 = vld [vmem:[#allocation14 + $0x2c0] sm:$0xff]
    %v715 = vld [vmem:[#allocation14 + $0x2c8] sm:$0xff]
    %v716 = vld [vmem:[#allocation14 + $0x2d0] sm:$0xff]
    %v717 = vld [vmem:[#allocation14 + $0x2d8] sm:$0xff]
    %v718 = vld [vmem:[#allocation14 + $0x2e0] sm:$0xff]
    %v719 = vld [vmem:[#allocation14 + $0x2e8] sm:$0xff]
    %v720 = vld [vmem:[#allocation14 + $0x2f0] sm:$0xff]
    %v721 = vld [vmem:[#allocation14 + $0x2f8] sm:$0xff]
    %v722 = vld [vmem:[#allocation14 + $0x300] sm:$0xff]
    %v723 = vld [vmem:[#allocation14 + $0x308] sm:$0xff]
    %v724 = vld [vmem:[#allocation14 + $0x310] sm:$0xff]
    %v725 = vld [vmem:[#allocation14 + $0x318] sm:$0xff]
    %v726 = vld [vmem:[#allocation14 + $0x320] sm:$0xff]
    %v727 = vld [vmem:[#allocation14 + $0x328] sm:$0xff]
    %v728 = vld [vmem:[#allocation14 + $0x330] sm:$0xff]
    %v729 = vld [vmem:[#allocation14 + $0x338] sm:$0xff]
    %v730 = vld [vmem:[#allocation14 + $0x340] sm:$0xff]
    %v731 = vld [vmem:[#allocation14 + $0x348] sm:$0xff]
    %v732 = vld [vmem:[#allocation14 + $0x350] sm:$0xff]
    %v733 = vld [vmem:[#allocation14 + $0x358] sm:$0xff]
    %v734 = vld [vmem:[#allocation14 + $0x360] sm:$0xff]
    %v735 = vld [vmem:[#allocation14 + $0x368] sm:$0xff]
    %v736 = vld [vmem:[#allocation14 + $0x370] sm:$0xff]
    %v737 = vld [vmem:[#allocation14 + $0x378] sm:$0xff]
    %v738 = vld [vmem:[#allocation14 + $0x380] sm:$0xff]
    %v739 = vld [vmem:[#allocation14 + $0x388] sm:$0xff]
    %v740 = vld [vmem:[#allocation14 + $0x390] sm:$0xff]
    %v741 = vld [vmem:[#allocation14 + $0x398] sm:$0xff]
    %v742 = vld [vmem:[#allocation14 + $0x3a0] sm:$0xff]
    %v743 = vld [vmem:[#allocation14 + $0x3a8] sm:$0xff]
    %v744 = vld [vmem:[#allocation14 + $0x3b0] sm:$0xff]
    %v745 = vld [vmem:[#allocation14 + $0x3b8] sm:$0xff]
    %v746 = vld [vmem:[#allocation14 + $0x3c0] sm:$0xff]
    %v747 = vld [vmem:[#allocation14 + $0x3c8] sm:$0xff]
    %v748 = vld [vmem:[#allocation14 + $0x3d0] sm:$0xff]
    %v749 = vld [vmem:[#allocation14 + $0x3d8] sm:$0xff]
    %v750 = vld [vmem:[#allocation14 + $0x3e0] sm:$0xff]
    %v751 = vld [vmem:[#allocation14 + $0x3e8] sm:$0xff]
    %v752 = vld [vmem:[#allocation14 + $0x3f0] sm:$0xff]
    %v753 = vld [vmem:[#allocation14 + $0x3f8] sm:$0xff]
    %v754 = vld [vmem:[%s6] sm:$0xf]
    %v756 = vlaneseq
    %v757 = vshrl.u32 %v756, 7
    %v758 = vsub.s32 0, %v757
    %v759 = vrot.slane %v754, %v758
    %v760 = vlaneseq
    %v761 = vshrl.u32 %v760, 7
    %v762 = vsub.s32 1, %v761
    %v763 = vrot.slane %v754, %v762
    %v764 = vlaneseq
    %v765 = vshrl.u32 %v764, 7
    %v766 = vsub.s32 2, %v765
    %v767 = vrot.slane %v754, %v766
    %v768 = vlaneseq
    %v769 = vshrl.u32 %v768, 7
    %v770 = vsub.s32 3, %v769
    %v771 = vrot.slane %v754, %v770
    %776 = vmatprep.subr.mxu0 %v627
    %777 = vmatpush1.msra.mxu0 %v626
    %778 = vmatprep.subr.mxu0 %v631
    %779 = vmatpush1.msra.mxu0 %v630
    %780 = vmatprep.subr.mxu0 %v635
    %781 = vmatpush1.msra.mxu0 %v634
    %782 = vmatprep.subr.mxu0 %v639
    %783 = vmatpush1.msra.mxu0 %v638
    %784 = vmatprep.subr.mxu0 %v643
    %785 = vmatpush1.msra.mxu0 %v642
    %786 = vmatprep.subr.mxu0 %v647
    %787 = vmatpush1.msra.mxu0 %v646
    %788 = vmatprep.subr.mxu0 %v651
    %789 = vmatpush1.msra.mxu0 %v650
    %790 = vmatprep.subr.mxu0 %v655
    %791 = vmatpush1.msra.mxu0 %v654
    %792 = vmatprep.subr.mxu0 %v659
    %793 = vmatpush1.msra.mxu0 %v658
    %794 = vmatprep.subr.mxu0 %v663
    %795 = vmatpush1.msra.mxu0 %v662
    %796 = vmatprep.subr.mxu0 %v667
    %797 = vmatpush1.msra.mxu0 %v666
    %798 = vmatprep.subr.mxu0 %v671
    %799 = vmatpush1.msra.mxu0 %v670
    %800 = vmatprep.subr.mxu0 %v675
    %801 = vmatpush1.msra.mxu0 %v674
    %802 = vmatprep.subr.mxu0 %v679
    %803 = vmatpush1.msra.mxu0 %v678
    %804 = vmatprep.subr.mxu0 %v683
    %805 = vmatpush1.msra.mxu0 %v682
    %806 = vmatprep.subr.mxu0 %v687
    %807 = vmatpush1.msra.mxu0 %v686
    %808 = vmatprep.subr.mxu0 %v691
    %809 = vmatpush1.msra.mxu0 %v690
    %810 = vmatprep.subr.mxu0 %v695
    %811 = vmatpush1.msra.mxu0 %v694
    %812 = vmatprep.subr.mxu0 %v699
    %813 = vmatpush1.msra.mxu0 %v698
    %814 = vmatprep.subr.mxu0 %v703
    %815 = vmatpush1.msra.mxu0 %v702
    %816 = vmatprep.subr.mxu0 %v707
    %817 = vmatpush1.msra.mxu0 %v706
    %818 = vmatprep.subr.mxu0 %v711
    %819 = vmatpush1.msra.mxu0 %v710
    %820 = vmatprep.subr.mxu0 %v715
    %821 = vmatpush1.msra.mxu0 %v714
    %822 = vmatprep.subr.mxu0 %v719
    %823 = vmatpush1.msra.mxu0 %v718
    %824 = vmatprep.subr.mxu0 %v723
    %825 = vmatpush1.msra.mxu0 %v722
    %826 = vmatprep.subr.mxu0 %v727
    %827 = vmatpush1.msra.mxu0 %v726
    %828 = vmatprep.subr.mxu0 %v731
    %829 = vmatpush1.msra.mxu0 %v730
    %830 = vmatprep.subr.mxu0 %v735
    %831 = vmatpush1.msra.mxu0 %v734
    %832 = vmatprep.subr.mxu0 %v739
    %833 = vmatpush1.msra.mxu0 %v738
    %834 = vmatprep.subr.mxu0 %v743
    %835 = vmatpush1.msra.mxu0 %v742
    %836 = vmatprep.subr.mxu0 %v747
    %837 = vmatpush1.msra.mxu0 %v746
    %838 = vmatprep.subr.mxu0 %v751
    %839 = vmatpush1.msra.mxu0 %v750
    %840 = vmatprep.mubr.f32.mxu0 %v595
    %841 = vmatmul.mubr.f32.gmra.mrb[0].mxu0 %v594
    %v842 = vpop.f32.mrb[0].mxu0
    %v843 = vadd.f32 %v759, %v842
    %v844 = vpop.f32.mrb[0].mxu0
    %v845 = vadd.f32 %v763, %v844
    %846 = vmatprep.mubr.f32.mxu0 %v597
    %847 = vmatmul.mubr.f32.gmra.mrb[0].mxu0 %v596
    %v848 = vpop.f32.mrb[0].mxu0
    %v849 = vadd.f32 %v759, %v848
    %v850 = vpop.f32.mrb[0].mxu0
    %v851 = vadd.f32 %v763, %v850
    %852 = vmatprep.mubr.f32.mxu0 %v599
    %853 = vmatmul.mubr.f32.gmra.mrb[0].mxu0 %v598
    %v854 = vpop.f32.mrb[0].mxu0
    %v855 = vadd.f32 %v759, %v854
    %v856 = vpop.f32.mrb[0].mxu0
    %v857 = vadd.f32 %v763, %v856
    %858 = vmatprep.mubr.f32.mxu0 %v601
    %859 = vmatmul.mubr.f32.gmra.mrb[0].mxu0 %v600
    %v860 = vpop.f32.mrb[0].mxu0
    %v861 = vadd.f32 %v759, %v860
    %v862 = vpop.f32.mrb[0].mxu0
    %v863 = vadd.f32 %v763, %v862
    %864 = vmatprep.mubr.f32.mxu0 %v603
    %865 = vmatmul.mubr.f32.gmra.mrb[0].mxu0 %v602
    %v866 = vpop.f32.mrb[0].mxu0
    %v867 = vadd.f32 %v759, %v866
    %v868 = vpop.f32.mrb[0].mxu0
    %v869 = vadd.f32 %v763, %v868
    %870 = vmatprep.mubr.f32.mxu0 %v605
    %871 = vmatmul.mubr.f32.gmra.mrb[0].mxu0 %v604
    %v872 = vpop.f32.mrb[0].mxu0
    %v873 = vadd.f32 %v759, %v872
    %v874 = vpop.f32.mrb[0].mxu0
    %v875 = vadd.f32 %v763, %v874
    %876 = vmatprep.mubr.f32.mxu0 %v607
    %877 = vmatmul.mubr.f32.gmra.mrb[0].mxu0 %v606
    %v878 = vpop.f32.mrb[0].mxu0
    %v879 = vadd.f32 %v759, %v878
    %v880 = vpop.f32.mrb[0].mxu0
    %v881 = vadd.f32 %v763, %v880
    %882 = vmatprep.mubr.f32.mxu0 %v609
    %883 = vmatmul.mubr.f32.gmra.mrb[0].mxu0 %v608
    %v884 = vpop.f32.mrb[0].mxu0
    %v885 = vadd.f32 %v759, %v884
    %v886 = vpop.f32.mrb[0].mxu0
    %v887 = vadd.f32 %v763, %v886
    %888 = vmatprep.mubr.f32.mxu0 %v611
    %889 = vmatmul.mubr.f32.gmra.mrb[0].mxu0 %v610
    %v890 = vpop.f32.mrb[0].mxu0
    %v891 = vadd.f32 %v759, %v890
    %v892 = vpop.f32.mrb[0].mxu0
    %v893 = vadd.f32 %v763, %v892
    %894 = vmatprep.mubr.f32.mxu0 %v613
    %895 = vmatmul.mubr.f32.gmra.mrb[0].mxu0 %v612
    %v896 = vpop.f32.mrb[0].mxu0
    %v897 = vadd.f32 %v759, %v896
    %v898 = vpop.f32.mrb[0].mxu0
    %v899 = vadd.f32 %v763, %v898
    %900 = vmatprep.mubr.f32.mxu0 %v615
    %901 = vmatmul.mubr.f32.gmra.mrb[0].mxu0 %v614
    %v902 = vpop.f32.mrb[0].mxu0
    %v903 = vadd.f32 %v759, %v902
    %v904 = vpop.f32.mrb[0].mxu0
    %v905 = vadd.f32 %v763, %v904
    %906 = vmatprep.mubr.f32.mxu0 %v617
    %907 = vmatmul.mubr.f32.gmra.mrb[0].mxu0 %v616
    %v908 = vpop.f32.mrb[0].mxu0
    %v909 = vadd.f32 %v759, %v908
    %v910 = vpop.f32.mrb[0].mxu0
    %v911 = vadd.f32 %v763, %v910
    %912 = vmatprep.mubr.f32.mxu0 %v619
    %913 = vmatmul.mubr.f32.gmra.mrb[0].mxu0 %v618
    %v914 = vpop.f32.mrb[0].mxu0
    %v915 = vadd.f32 %v759, %v914
    %v916 = vpop.f32.mrb[0].mxu0
    %v917 = vadd.f32 %v763, %v916
    %918 = vmatprep.mubr.f32.mxu0 %v621
    %919 = vmatmul.mubr.f32.gmra.mrb[0].mxu0 %v620
    %v920 = vpop.f32.mrb[0].mxu0
    %v921 = vadd.f32 %v759, %v920
    %v922 = vpop.f32.mrb[0].mxu0
    %v923 = vadd.f32 %v763, %v922
    %924 = vmatprep.mubr.f32.mxu0 %v623
    %925 = vmatmul.mubr.f32.gmra.mrb[0].mxu0 %v622
    %v926 = vpop.f32.mrb[0].mxu0
    %v927 = vadd.f32 %v759, %v926
    %v928 = vpop.f32.mrb[0].mxu0
    %v929 = vadd.f32 %v763, %v928
    %930 = vmatprep.mubr.f32.mxu0 %v625
    %931 = vmatmul.mubr.f32.gmra.mrb[0].mxu0 %v624
    %v932 = vpop.f32.mrb[0].mxu0
    %v933 = vadd.f32 %v759, %v932
    %v934 = vpop.f32.mrb[0].mxu0
    %v935 = vadd.f32 %v763, %v934
    %936 = vdwg.mxu0
    %937 = vmatprep.subr.mxu0 %v629
    %938 = vmatpush1.msra.mxu0 %v628
    %939 = vmatprep.subr.mxu0 %v633
    %940 = vmatpush1.msra.mxu0 %v632
    %941 = vmatprep.subr.mxu0 %v637
    %942 = vmatpush1.msra.mxu0 %v636
    %943 = vmatprep.subr.mxu0 %v641
    %944 = vmatpush1.msra.mxu0 %v640
    %945 = vmatprep.subr.mxu0 %v645
    %946 = vmatpush1.msra.mxu0 %v644
    %947 = vmatprep.subr.mxu0 %v649
    %948 = vmatpush1.msra.mxu0 %v648
    %949 = vmatprep.subr.mxu0 %v653
    %950 = vmatpush1.msra.mxu0 %v652
    %951 = vmatprep.subr.mxu0 %v657
    %952 = vmatpush1.msra.mxu0 %v656
    %953 = vmatprep.subr.mxu0 %v661
    %954 = vmatpush1.msra.mxu0 %v660
    %955 = vmatprep.subr.mxu0 %v665
    %956 = vmatpush1.msra.mxu0 %v664
    %957 = vmatprep.subr.mxu0 %v669
    %958 = vmatpush1.msra.mxu0 %v668
    %959 = vmatprep.subr.mxu0 %v673
    %960 = vmatpush1.msra.mxu0 %v672
    %961 = vmatprep.subr.mxu0 %v677
    %962 = vmatpush1.msra.mxu0 %v676
    %963 = vmatprep.subr.mxu0 %v681
    %964 = vmatpush1.msra.mxu0 %v680
    %965 = vmatprep.subr.mxu0 %v685
    %966 = vmatpush1.msra.mxu0 %v684
    %967 = vmatprep.subr.mxu0 %v689
    %968 = vmatpush1.msra.mxu0 %v688
    %969 = vmatprep.subr.mxu0 %v693
    %970 = vmatpush1.msra.mxu0 %v692
    %971 = vmatprep.subr.mxu0 %v697
    %972 = vmatpush1.msra.mxu0 %v696
    %973 = vmatprep.subr.mxu0 %v701
    %974 = vmatpush1.msra.mxu0 %v700
    %975 = vmatprep.subr.mxu0 %v705
    %976 = vmatpush1.msra.mxu0 %v704
    %977 = vmatprep.subr.mxu0 %v709
    %978 = vmatpush1.msra.mxu0 %v708
    %979 = vmatprep.subr.mxu0 %v713
    %980 = vmatpush1.msra.mxu0 %v712
    %981 = vmatprep.subr.mxu0 %v717
    %982 = vmatpush1.msra.mxu0 %v716
    %983 = vmatprep.subr.mxu0 %v721
    %984 = vmatpush1.msra.mxu0 %v720
    %985 = vmatprep.subr.mxu0 %v725
    %986 = vmatpush1.msra.mxu0 %v724
    %987 = vmatprep.subr.mxu0 %v729
    %988 = vmatpush1.msra.mxu0 %v728
    %989 = vmatprep.subr.mxu0 %v733
    %990 = vmatpush1.msra.mxu0 %v732
    %991 = vmatprep.subr.mxu0 %v737
    %992 = vmatpush1.msra.mxu0 %v736
    %993 = vmatprep.subr.mxu0 %v741
    %994 = vmatpush1.msra.mxu0 %v740
    %995 = vmatprep.subr.mxu0 %v745
    %996 = vmatpush1.msra.mxu0 %v744
    %997 = vmatprep.subr.mxu0 %v749
    %998 = vmatpush1.msra.mxu0 %v748
    %999 = vmatprep.subr.mxu0 %v753
    %1000 = vmatpush1.msra.mxu0 %v752
    %1001 = vmatprep.mubr.f32.mxu0 %v595
    %1002 = vmatmul.mubr.f32.gmra.mrb[0].mxu0 %v594
    %v1003 = vpop.f32.mrb[0].mxu0
    %v1004 = vadd.f32 %v767, %v1003
    %v1005 = vpop.f32.mrb[0].mxu0
    %v1006 = vadd.f32 %v771, %v1005
    %1007 = vmatprep.mubr.f32.mxu0 %v597
    %1008 = vmatmul.mubr.f32.gmra.mrb[0].mxu0 %v596
    %v1009 = vpop.f32.mrb[0].mxu0
    %v1010 = vadd.f32 %v767, %v1009
    %v1011 = vpop.f32.mrb[0].mxu0
    %v1012 = vadd.f32 %v771, %v1011
    %1013 = vmatprep.mubr.f32.mxu0 %v599
    %1014 = vmatmul.mubr.f32.gmra.mrb[0].mxu0 %v598
    %v1015 = vpop.f32.mrb[0].mxu0
    %v1016 = vadd.f32 %v767, %v1015
    %v1017 = vpop.f32.mrb[0].mxu0
    %v1018 = vadd.f32 %v771, %v1017
    %1019 = vmatprep.mubr.f32.mxu0 %v601
    %1020 = vmatmul.mubr.f32.gmra.mrb[0].mxu0 %v600
    %v1021 = vpop.f32.mrb[0].mxu0
    %v1022 = vadd.f32 %v767, %v1021
    %v1023 = vpop.f32.mrb[0].mxu0
    %v1024 = vadd.f32 %v771, %v1023
    %1025 = vmatprep.mubr.f32.mxu0 %v603
    %1026 = vmatmul.mubr.f32.gmra.mrb[0].mxu0 %v602
    %v1027 = vpop.f32.mrb[0].mxu0
    %v1028 = vadd.f32 %v767, %v1027
    %v1029 = vpop.f32.mrb[0].mxu0
    %v1030 = vadd.f32 %v771, %v1029
    %1031 = vmatprep.mubr.f32.mxu0 %v605
    %1032 = vmatmul.mubr.f32.gmra.mrb[0].mxu0 %v604
    %v1033 = vpop.f32.mrb[0].mxu0
    %v1034 = vadd.f32 %v767, %v1033
    %v1035 = vpop.f32.mrb[0].mxu0
    %v1036 = vadd.f32 %v771, %v1035
    %1037 = vmatprep.mubr.f32.mxu0 %v607
    %1038 = vmatmul.mubr.f32.gmra.mrb[0].mxu0 %v606
    %v1039 = vpop.f32.mrb[0].mxu0
    %v1040 = vadd.f32 %v767, %v1039
    %v1041 = vpop.f32.mrb[0].mxu0
    %v1042 = vadd.f32 %v771, %v1041
    %1043 = vmatprep.mubr.f32.mxu0 %v609
    %1044 = vmatmul.mubr.f32.gmra.mrb[0].mxu0 %v608
    %v1045 = vpop.f32.mrb[0].mxu0
    %v1046 = vadd.f32 %v767, %v1045
    %v1047 = vpop.f32.mrb[0].mxu0
    %v1048 = vadd.f32 %v771, %v1047
    %1049 = vmatprep.mubr.f32.mxu0 %v611
    %1050 = vmatmul.mubr.f32.gmra.mrb[0].mxu0 %v610
    %v1051 = vpop.f32.mrb[0].mxu0
    %v1052 = vadd.f32 %v767, %v1051
    %v1053 = vpop.f32.mrb[0].mxu0
    %v1054 = vadd.f32 %v771, %v1053
    %1055 = vmatprep.mubr.f32.mxu0 %v613
    %1056 = vmatmul.mubr.f32.gmra.mrb[0].mxu0 %v612
    %v1057 = vpop.f32.mrb[0].mxu0
    %v1058 = vadd.f32 %v767, %v1057
    %v1059 = vpop.f32.mrb[0].mxu0
    %v1060 = vadd.f32 %v771, %v1059
    %1061 = vmatprep.mubr.f32.mxu0 %v615
    %1062 = vmatmul.mubr.f32.gmra.mrb[0].mxu0 %v614
    %v1063 = vpop.f32.mrb[0].mxu0
    %v1064 = vadd.f32 %v767, %v1063
    %v1065 = vpop.f32.mrb[0].mxu0
    %v1066 = vadd.f32 %v771, %v1065
    %1067 = vmatprep.mubr.f32.mxu0 %v617
    %1068 = vmatmul.mubr.f32.gmra.mrb[0].mxu0 %v616
    %v1069 = vpop.f32.mrb[0].mxu0
    %v1070 = vadd.f32 %v767, %v1069
    %v1071 = vpop.f32.mrb[0].mxu0
    %v1072 = vadd.f32 %v771, %v1071
    %1073 = vmatprep.mubr.f32.mxu0 %v619
    %1074 = vmatmul.mubr.f32.gmra.mrb[0].mxu0 %v618
    %v1075 = vpop.f32.mrb[0].mxu0
    %v1076 = vadd.f32 %v767, %v1075
    %v1077 = vpop.f32.mrb[0].mxu0
    %v1078 = vadd.f32 %v771, %v1077
    %1079 = vmatprep.mubr.f32.mxu0 %v621
    %1080 = vmatmul.mubr.f32.gmra.mrb[0].mxu0 %v620
    %v1081 = vpop.f32.mrb[0].mxu0
    %v1082 = vadd.f32 %v767, %v1081
    %v1083 = vpop.f32.mrb[0].mxu0
    %v1084 = vadd.f32 %v771, %v1083
    %1085 = vmatprep.mubr.f32.mxu0 %v623
    %1086 = vmatmul.mubr.f32.gmra.mrb[0].mxu0 %v622
    %v1087 = vpop.f32.mrb[0].mxu0
    %v1088 = vadd.f32 %v767, %v1087
    %v1089 = vpop.f32.mrb[0].mxu0
    %v1090 = vadd.f32 %v771, %v1089
    %1091 = vmatprep.mubr.f32.mxu0 %v625
    %1092 = vmatmul.mubr.f32.gmra.mrb[0].mxu0 %v624
    %v1093 = vpop.f32.mrb[0].mxu0
    %v1094 = vadd.f32 %v767, %v1093
    %v1095 = vpop.f32.mrb[0].mxu0
    %v1096 = vadd.f32 %v771, %v1095
    %1097 = vdwg.mxu0
    %v1098 = vtanh.pop %v843
    %v1099 = vtanh.pop %v845
    %v1100 = vtanh.pop %v849
    %v1101 = vtanh.pop %v851
    %v1102 = vtanh.pop %v855
    %v1103 = vtanh.pop %v857
    %v1104 = vtanh.pop %v861
    %v1105 = vtanh.pop %v863
    %v1106 = vtanh.pop %v867
    %v1107 = vtanh.pop %v869
    %v1108 = vtanh.pop %v873
    %v1109 = vtanh.pop %v875
    %v1110 = vtanh.pop %v879
    %v1111 = vtanh.pop %v881
    %v1112 = vtanh.pop %v885
    %v1113 = vtanh.pop %v887
    %v1114 = vtanh.pop %v891
    %v1115 = vtanh.pop %v893
    %v1116 = vtanh.pop %v897
    %v1117 = vtanh.pop %v899
    %v1118 = vtanh.pop %v903
    %v1119 = vtanh.pop %v905
    %v1120 = vtanh.pop %v909
    %v1121 = vtanh.pop %v911
    %v1122 = vtanh.pop %v915
    %v1123 = vtanh.pop %v917
    %v1124 = vtanh.pop %v921
    %v1125 = vtanh.pop %v923
    %v1126 = vtanh.pop %v927
    %v1127 = vtanh.pop %v929
    %v1128 = vtanh.pop %v933
    %v1129 = vtanh.pop %v935
    %v1130 = vxor.u32 %v1004, 2147483648
    %v1131 = vxor.u32 %v1006, 2147483648
    %v1132 = vxor.u32 %v1010, 2147483648
    %v1133 = vxor.u32 %v1012, 2147483648
    %v1134 = vxor.u32 %v1016, 2147483648
    %v1135 = vxor.u32 %v1018, 2147483648
    %v1136 = vxor.u32 %v1022, 2147483648
    %v1137 = vxor.u32 %v1024, 2147483648
    %v1138 = vxor.u32 %v1028, 2147483648
    %v1139 = vxor.u32 %v1030, 2147483648
    %v1140 = vxor.u32 %v1034, 2147483648
    %v1141 = vxor.u32 %v1036, 2147483648
    %v1142 = vxor.u32 %v1040, 2147483648
    %v1143 = vxor.u32 %v1042, 2147483648
    %v1144 = vxor.u32 %v1046, 2147483648
    %v1145 = vxor.u32 %v1048, 2147483648
    %v1146 = vxor.u32 %v1052, 2147483648
    %v1147 = vxor.u32 %v1054, 2147483648
    %v1148 = vxor.u32 %v1058, 2147483648
    %v1149 = vxor.u32 %v1060, 2147483648
    %v1150 = vxor.u32 %v1064, 2147483648
    %v1151 = vxor.u32 %v1066, 2147483648
    %v1152 = vxor.u32 %v1070, 2147483648
    %v1153 = vxor.u32 %v1072, 2147483648
    %v1154 = vxor.u32 %v1076, 2147483648
    %v1155 = vxor.u32 %v1078, 2147483648
    %v1156 = vxor.u32 %v1082, 2147483648
    %v1157 = vxor.u32 %v1084, 2147483648
    %v1158 = vxor.u32 %v1088, 2147483648
    %v1159 = vxor.u32 %v1090, 2147483648
    %v1160 = vxor.u32 %v1094, 2147483648
    %v1161 = vxor.u32 %v1096, 2147483648
    %v1162 = vmul.f32 %v1130, 1.442695
    %v1163 = vpow.pop %v1162
    %v1164 = vmul.f32 %v1131, 1.442695
    %v1165 = vpow.pop %v1164
    %v1166 = vmul.f32 %v1132, 1.442695
    %v1167 = vpow.pop %v1166
    %v1168 = vmul.f32 %v1133, 1.442695
    %v1169 = vpow.pop %v1168
    %v1170 = vmul.f32 %v1134, 1.442695
    %v1171 = vpow.pop %v1170
    %v1172 = vmul.f32 %v1135, 1.442695
    %v1173 = vpow.pop %v1172
    %v1174 = vmul.f32 %v1136, 1.442695
    %v1175 = vpow.pop %v1174
    %v1176 = vmul.f32 %v1137, 1.442695
    %v1177 = vpow.pop %v1176
    %v1178 = vmul.f32 %v1138, 1.442695
    %v1179 = vpow.pop %v1178
    %v1180 = vmul.f32 %v1139, 1.442695
    %v1181 = vpow.pop %v1180
    %v1182 = vmul.f32 %v1140, 1.442695
    %v1183 = vpow.pop %v1182
    %v1184 = vmul.f32 %v1141, 1.442695
    %v1185 = vpow.pop %v1184
    %v1186 = vmul.f32 %v1142, 1.442695
    %v1187 = vpow.pop %v1186
    %v1188 = vmul.f32 %v1143, 1.442695
    %v1189 = vpow.pop %v1188
    %v1190 = vmul.f32 %v1144, 1.442695
    %v1191 = vpow.pop %v1190
    %v1192 = vmul.f32 %v1145, 1.442695
    %v1193 = vpow.pop %v1192
    %v1194 = vmul.f32 %v1146, 1.442695
    %v1195 = vpow.pop %v1194
    %v1196 = vmul.f32 %v1147, 1.442695
    %v1197 = vpow.pop %v1196
    %v1198 = vmul.f32 %v1148, 1.442695
    %v1199 = vpow.pop %v1198
    %v1200 = vmul.f32 %v1149, 1.442695
    %v1201 = vpow.pop %v1200
    %v1202 = vmul.f32 %v1150, 1.442695
    %v1203 = vpow.pop %v1202
    %v1204 = vmul.f32 %v1151, 1.442695
    %v1205 = vpow.pop %v1204
    %v1206 = vmul.f32 %v1152, 1.442695
    %v1207 = vpow.pop %v1206
    %v1208 = vmul.f32 %v1153, 1.442695
    %v1209 = vpow.pop %v1208
    %v1210 = vmul.f32 %v1154, 1.442695
    %v1211 = vpow.pop %v1210
    %v1212 = vmul.f32 %v1155, 1.442695
    %v1213 = vpow.pop %v1212
    %v1214 = vmul.f32 %v1156, 1.442695
    %v1215 = vpow.pop %v1214
    %v1216 = vmul.f32 %v1157, 1.442695
    %v1217 = vpow.pop %v1216
    %v1218 = vmul.f32 %v1158, 1.442695
    %v1219 = vpow.pop %v1218
    %v1220 = vmul.f32 %v1159, 1.442695
    %v1221 = vpow.pop %v1220
    %v1222 = vmul.f32 %v1160, 1.442695
    %v1223 = vpow.pop %v1222
    %v1224 = vmul.f32 %v1161, 1.442695
    %v1225 = vpow.pop %v1224
    %v1226 = vadd.f32 %v1163, 1.0
    %v1227 = vadd.f32 %v1165, 1.0
    %v1228 = vadd.f32 %v1167, 1.0
    %v1229 = vadd.f32 %v1169, 1.0
    %v1230 = vadd.f32 %v1171, 1.0
    %v1231 = vadd.f32 %v1173, 1.0
    %v1232 = vadd.f32 %v1175, 1.0
    %v1233 = vadd.f32 %v1177, 1.0
    %v1234 = vadd.f32 %v1179, 1.0
    %v1235 = vadd.f32 %v1181, 1.0
    %v1236 = vadd.f32 %v1183, 1.0
    %v1237 = vadd.f32 %v1185, 1.0
    %v1238 = vadd.f32 %v1187, 1.0
    %v1239 = vadd.f32 %v1189, 1.0
    %v1240 = vadd.f32 %v1191, 1.0
    %v1241 = vadd.f32 %v1193, 1.0
    %v1242 = vadd.f32 %v1195, 1.0
    %v1243 = vadd.f32 %v1197, 1.0
    %v1244 = vadd.f32 %v1199, 1.0
    %v1245 = vadd.f32 %v1201, 1.0
    %v1246 = vadd.f32 %v1203, 1.0
    %v1247 = vadd.f32 %v1205, 1.0
    %v1248 = vadd.f32 %v1207, 1.0
    %v1249 = vadd.f32 %v1209, 1.0
    %v1250 = vadd.f32 %v1211, 1.0
    %v1251 = vadd.f32 %v1213, 1.0
    %v1252 = vadd.f32 %v1215, 1.0
    %v1253 = vadd.f32 %v1217, 1.0
    %v1254 = vadd.f32 %v1219, 1.0
    %v1255 = vadd.f32 %v1221, 1.0
    %v1256 = vadd.f32 %v1223, 1.0
    %v1257 = vadd.f32 %v1225, 1.0
    %v1258 = vrcp.pop %v1226
    %v1259 = vmul.f32 1.0, %v1258
    %v1260 = vrcp.pop %v1227
    %v1261 = vmul.f32 1.0, %v1260
    %v1262 = vrcp.pop %v1228
    %v1263 = vmul.f32 1.0, %v1262
    %v1264 = vrcp.pop %v1229
    %v1265 = vmul.f32 1.0, %v1264
    %v1266 = vrcp.pop %v1230
    %v1267 = vmul.f32 1.0, %v1266
    %v1268 = vrcp.pop %v1231
    %v1269 = vmul.f32 1.0, %v1268
    %v1270 = vrcp.pop %v1232
    %v1271 = vmul.f32 1.0, %v1270
    %v1272 = vrcp.pop %v1233
    %v1273 = vmul.f32 1.0, %v1272
    %v1274 = vrcp.pop %v1234
    %v1275 = vmul.f32 1.0, %v1274
    %v1276 = vrcp.pop %v1235
    %v1277 = vmul.f32 1.0, %v1276
    %v1278 = vrcp.pop %v1236
    %v1279 = vmul.f32 1.0, %v1278
    %v1280 = vrcp.pop %v1237
    %v1281 = vmul.f32 1.0, %v1280
    %v1282 = vrcp.pop %v1238
    %v1283 = vmul.f32 1.0, %v1282
    %v1284 = vrcp.pop %v1239
    %v1285 = vmul.f32 1.0, %v1284
    %v1286 = vrcp.pop %v1240
    %v1287 = vmul.f32 1.0, %v1286
    %v1288 = vrcp.pop %v1241
    %v1289 = vmul.f32 1.0, %v1288
    %v1290 = vrcp.pop %v1242
    %v1291 = vmul.f32 1.0, %v1290
    %v1292 = vrcp.pop %v1243
    %v1293 = vmul.f32 1.0, %v1292
    %v1294 = vrcp.pop %v1244
    %v1295 = vmul.f32 1.0, %v1294
    %v1296 = vrcp.pop %v1245
    %v1297 = vmul.f32 1.0, %v1296
    %v1298 = vrcp.pop %v1246
    %v1299 = vmul.f32 1.0, %v1298
    %v1300 = vrcp.pop %v1247
    %v1301 = vmul.f32 1.0, %v1300
    %v1302 = vrcp.pop %v1248
    %v1303 = vmul.f32 1.0, %v1302
    %v1304 = vrcp.pop %v1249
    %v1305 = vmul.f32 1.0, %v1304
    %v1306 = vrcp.pop %v1250
    %v1307 = vmul.f32 1.0, %v1306
    %v1308 = vrcp.pop %v1251
    %v1309 = vmul.f32 1.0, %v1308
    %v1310 = vrcp.pop %v1252
    %v1311 = vmul.f32 1.0, %v1310
    %v1312 = vrcp.pop %v1253
    %v1313 = vmul.f32 1.0, %v1312
    %v1314 = vrcp.pop %v1254
    %v1315 = vmul.f32 1.0, %v1314
    %v1316 = vrcp.pop %v1255
    %v1317 = vmul.f32 1.0, %v1316
    %v1318 = vrcp.pop %v1256
    %v1319 = vmul.f32 1.0, %v1318
    %v1320 = vrcp.pop %v1257
    %v1321 = vmul.f32 1.0, %v1320
    %v1322 = vmul.f32 %v1098, %v1259
    %v1323 = vmul.f32 %v1099, %v1261
    %v1324 = vmul.f32 %v1100, %v1263
    %v1325 = vmul.f32 %v1101, %v1265
    %v1326 = vmul.f32 %v1102, %v1267
    %v1327 = vmul.f32 %v1103, %v1269
    %v1328 = vmul.f32 %v1104, %v1271
    %v1329 = vmul.f32 %v1105, %v1273
    %v1330 = vmul.f32 %v1106, %v1275
    %v1331 = vmul.f32 %v1107, %v1277
    %v1332 = vmul.f32 %v1108, %v1279
    %v1333 = vmul.f32 %v1109, %v1281
    %v1334 = vmul.f32 %v1110, %v1283
    %v1335 = vmul.f32 %v1111, %v1285
    %v1336 = vmul.f32 %v1112, %v1287
    %v1337 = vmul.f32 %v1113, %v1289
    %v1338 = vmul.f32 %v1114, %v1291
    %v1339 = vmul.f32 %v1115, %v1293
    %v1340 = vmul.f32 %v1116, %v1295
    %v1341 = vmul.f32 %v1117, %v1297
    %v1342 = vmul.f32 %v1118, %v1299
    %v1343 = vmul.f32 %v1119, %v1301
    %v1344 = vmul.f32 %v1120, %v1303
    %v1345 = vmul.f32 %v1121, %v1305
    %v1346 = vmul.f32 %v1122, %v1307
    %v1347 = vmul.f32 %v1123, %v1309
    %v1348 = vmul.f32 %v1124, %v1311
    %v1349 = vmul.f32 %v1125, %v1313
    %v1350 = vmul.f32 %v1126, %v1315
    %v1351 = vmul.f32 %v1127, %v1317
    %v1352 = vmul.f32 %v1128, %v1319
    %v1353 = vmul.f32 %v1129, %v1321
    %v1354 = vld [vmem:[%s7] sm:$0x3]
    %v1356 = vlaneseq
    %v1357 = vshrl.u32 %v1356, 7
    %v1358 = vsub.s32 0, %v1357
    %v1359 = vrot.slane %v1354, %v1358
    %v1360 = vlaneseq
    %v1361 = vshrl.u32 %v1360, 7
    %v1362 = vsub.s32 1, %v1361
    %v1363 = vrot.slane %v1354, %v1362
    %v1366 = vmul.f32 %v1322, %v1359
    %v1367 = vmul.f32 %v1323, %v1363
    %v1368 = vmul.f32 %v1324, %v1359
    %v1369 = vmul.f32 %v1325, %v1363
    %v1370 = vmul.f32 %v1326, %v1359
    %v1371 = vmul.f32 %v1327, %v1363
    %v1372 = vmul.f32 %v1328, %v1359
    %v1373 = vmul.f32 %v1329, %v1363
    %v1374 = vmul.f32 %v1330, %v1359
    %v1375 = vmul.f32 %v1331, %v1363
    %v1376 = vmul.f32 %v1332, %v1359
    %v1377 = vmul.f32 %v1333, %v1363
    %v1378 = vmul.f32 %v1334, %v1359
    %v1379 = vmul.f32 %v1335, %v1363
    %v1380 = vmul.f32 %v1336, %v1359
    %v1381 = vmul.f32 %v1337, %v1363
    %v1382 = vmul.f32 %v1338, %v1359
    %v1383 = vmul.f32 %v1339, %v1363
    %v1384 = vmul.f32 %v1340, %v1359
    %v1385 = vmul.f32 %v1341, %v1363
    %v1386 = vmul.f32 %v1342, %v1359
    %v1387 = vmul.f32 %v1343, %v1363
    %v1388 = vmul.f32 %v1344, %v1359
    %v1389 = vmul.f32 %v1345, %v1363
    %v1390 = vmul.f32 %v1346, %v1359
    %v1391 = vmul.f32 %v1347, %v1363
    %v1392 = vmul.f32 %v1348, %v1359
    %v1393 = vmul.f32 %v1349, %v1363
    %v1394 = vmul.f32 %v1350, %v1359
    %v1395 = vmul.f32 %v1351, %v1363
    %v1396 = vmul.f32 %v1352, %v1359
    %v1397 = vmul.f32 %v1353, %v1363
    %v1398 = vadd.f32 %v1366, %v1367
    %1399 = vadd.xlane.f32.xlu0 %v1398
    %v1400 = vpop.xlane.xlu0 %1399
    %v1401 = vadd.f32 %v1368, %v1369
    %1402 = vadd.xlane.f32.xlu0 %v1401
    %v1403 = vpop.xlane.xlu0 %1402
    %v1404 = vadd.f32 %v1370, %v1371
    %1405 = vadd.xlane.f32.xlu0 %v1404
    %v1406 = vpop.xlane.xlu0 %1405
    %v1407 = vadd.f32 %v1372, %v1373
    %1408 = vadd.xlane.f32.xlu0 %v1407
    %v1409 = vpop.xlane.xlu0 %1408
    %v1410 = vadd.f32 %v1374, %v1375
    %1411 = vadd.xlane.f32.xlu0 %v1410
    %v1412 = vpop.xlane.xlu0 %1411
    %v1413 = vadd.f32 %v1376, %v1377
    %1414 = vadd.xlane.f32.xlu0 %v1413
    %v1415 = vpop.xlane.xlu0 %1414
    %v1416 = vadd.f32 %v1378, %v1379
    %1417 = vadd.xlane.f32.xlu0 %v1416
    %v1418 = vpop.xlane.xlu0 %1417
    %v1419 = vadd.f32 %v1380, %v1381
    %1420 = vadd.xlane.f32.xlu0 %v1419
    %v1421 = vpop.xlane.xlu0 %1420
    %v1422 = vadd.f32 %v1382, %v1383
    %1423 = vadd.xlane.f32.xlu0 %v1422
    %v1424 = vpop.xlane.xlu0 %1423
    %v1425 = vadd.f32 %v1384, %v1385
    %1426 = vadd.xlane.f32.xlu0 %v1425
    %v1427 = vpop.xlane.xlu0 %1426
    %v1428 = vadd.f32 %v1386, %v1387
    %1429 = vadd.xlane.f32.xlu0 %v1428
    %v1430 = vpop.xlane.xlu0 %1429
    %v1431 = vadd.f32 %v1388, %v1389
    %1432 = vadd.xlane.f32.xlu0 %v1431
    %v1433 = vpop.xlane.xlu0 %1432
    %v1434 = vadd.f32 %v1390, %v1391
    %1435 = vadd.xlane.f32.xlu0 %v1434
    %v1436 = vpop.xlane.xlu0 %1435
    %v1437 = vadd.f32 %v1392, %v1393
    %1438 = vadd.xlane.f32.xlu0 %v1437
    %v1439 = vpop.xlane.xlu0 %1438
    %v1440 = vadd.f32 %v1394, %v1395
    %1441 = vadd.xlane.f32.xlu0 %v1440
    %v1442 = vpop.xlane.xlu0 %1441
    %v1443 = vadd.f32 %v1396, %v1397
    %1444 = vadd.xlane.f32.xlu0 %v1443
    %v1445 = vpop.xlane.xlu0 %1444
    %v1446 = vld [vmem:[#allocation7] sm:$0x1]
    %v1448 = vlaneseq
    %v1449 = vshrl.u32 %v1448, 7
    %v1450 = vsub.s32 0, %v1449
    %v1451 = vrot.slane %v1446, %v1450
    %v1453 = vadd.f32 %v1400, %v1451
    %v1454 = vadd.f32 %v1403, %v1451
    %v1455 = vadd.f32 %v1406, %v1451
    %v1456 = vadd.f32 %v1409, %v1451
    %v1457 = vadd.f32 %v1412, %v1451
    %v1458 = vadd.f32 %v1415, %v1451
    %v1459 = vadd.f32 %v1418, %v1451
    %v1460 = vadd.f32 %v1421, %v1451
    %v1461 = vadd.f32 %v1424, %v1451
    %v1462 = vadd.f32 %v1427, %v1451
    %v1463 = vadd.f32 %v1430, %v1451
    %v1464 = vadd.f32 %v1433, %v1451
    %v1465 = vadd.f32 %v1436, %v1451
    %v1466 = vadd.f32 %v1439, %v1451
    %v1467 = vadd.f32 %v1442, %v1451
    %v1468 = vadd.f32 %v1445, %v1451
    %s1469 = sadd.s32 0, 0
    %s1470 = smul.u32 %s1469, 128
    %v1471 = vlaneseq
    %v1472 = vshrl.u32 %v1471, 7
    %v1473 = vadd.s32 %v1472, 8
    %v1474 = vadd.s32 %v1472, 16
    %v1475 = vadd.s32 %v1472, 24
    %v1476 = vadd.s32 %v1472, 32
    %v1477 = vadd.s32 %v1472, 40
    %v1478 = vadd.s32 %v1472, 48
    %v1479 = vadd.s32 %v1472, 56
    %v1480 = vadd.s32 %v1472, 64
    %v1481 = vadd.s32 %v1472, 72
    %v1482 = vadd.s32 %v1472, 80
    %v1483 = vadd.s32 %v1472, 88
    %v1484 = vadd.s32 %v1472, 96
    %v1485 = vadd.s32 %v1472, 104
    %v1486 = vadd.s32 %v1472, 112
    %v1487 = vadd.s32 %v1472, 120
    %v1488 = vstv %s1470
    %v1489 = vadd.s32 %v1488, %v1472
    %v1490 = vadd.s32 %v1488, %v1473
    %v1491 = vadd.s32 %v1488, %v1474
    %v1492 = vadd.s32 %v1488, %v1475
    %v1493 = vadd.s32 %v1488, %v1476
    %v1494 = vadd.s32 %v1488, %v1477
    %v1495 = vadd.s32 %v1488, %v1478
    %v1496 = vadd.s32 %v1488, %v1479
    %v1497 = vadd.s32 %v1488, %v1480
    %v1498 = vadd.s32 %v1488, %v1481
    %v1499 = vadd.s32 %v1488, %v1482
    %v1500 = vadd.s32 %v1488, %v1483
    %v1501 = vadd.s32 %v1488, %v1484
    %v1502 = vadd.s32 %v1488, %v1485
    %v1503 = vadd.s32 %v1488, %v1486
    %v1504 = vadd.s32 %v1488, %v1487
    %v1505 = vstv %s103
    %vm1506 = vcmp.lt.s32.totalorder %v1489, %v1505
    %vm1507 = vcmp.lt.s32.totalorder %v1490, %v1505
    %vm1508 = vcmp.lt.s32.totalorder %v1491, %v1505
    %vm1509 = vcmp.lt.s32.totalorder %v1492, %v1505
    %vm1510 = vcmp.lt.s32.totalorder %v1493, %v1505
    %vm1511 = vcmp.lt.s32.totalorder %v1494, %v1505
    %vm1512 = vcmp.lt.s32.totalorder %v1495, %v1505
    %vm1513 = vcmp.lt.s32.totalorder %v1496, %v1505
    %vm1514 = vcmp.lt.s32.totalorder %v1497, %v1505
    %vm1515 = vcmp.lt.s32.totalorder %v1498, %v1505
    %vm1516 = vcmp.lt.s32.totalorder %v1499, %v1505
    %vm1517 = vcmp.lt.s32.totalorder %v1500, %v1505
    %vm1518 = vcmp.lt.s32.totalorder %v1501, %v1505
    %vm1519 = vcmp.lt.s32.totalorder %v1502, %v1505
    %vm1520 = vcmp.lt.s32.totalorder %v1503, %v1505
    %vm1521 = vcmp.lt.s32.totalorder %v1504, %v1505
    %v1522 = vsel %vm1506, %v1453, -1e+30
    %v1523 = vsel %vm1507, %v1454, -1e+30
    %v1524 = vsel %vm1508, %v1455, -1e+30
    %v1525 = vsel %vm1509, %v1456, -1e+30
    %v1526 = vsel %vm1510, %v1457, -1e+30
    %v1527 = vsel %vm1511, %v1458, -1e+30
    %v1528 = vsel %vm1512, %v1459, -1e+30
    %v1529 = vsel %vm1513, %v1460, -1e+30
    %v1530 = vsel %vm1514, %v1461, -1e+30
    %v1531 = vsel %vm1515, %v1462, -1e+30
    %v1532 = vsel %vm1516, %v1463, -1e+30
    %v1533 = vsel %vm1517, %v1464, -1e+30
    %v1534 = vsel %vm1518, %v1465, -1e+30
    %v1535 = vsel %vm1519, %v1466, -1e+30
    %v1536 = vsel %vm1520, %v1467, -1e+30
    %v1537 = vsel %vm1521, %v1468, -1e+30
    %v1538 = vld [vmem:[#allocation11] sm:$0xff]
    %v1539 = vld [vmem:[#allocation11 + $0x8] sm:$0xff]
    %v1540 = vld [vmem:[#allocation11 + $0x10] sm:$0xff]
    %v1541 = vld [vmem:[#allocation11 + $0x18] sm:$0xff]
    %v1542 = vld [vmem:[#allocation11 + $0x20] sm:$0xff]
    %v1543 = vld [vmem:[#allocation11 + $0x28] sm:$0xff]
    %v1544 = vld [vmem:[#allocation11 + $0x30] sm:$0xff]
    %v1545 = vld [vmem:[#allocation11 + $0x38] sm:$0xff]
    %v1546 = vld [vmem:[#allocation11 + $0x40] sm:$0xff]
    %v1547 = vld [vmem:[#allocation11 + $0x48] sm:$0xff]
    %v1548 = vld [vmem:[#allocation11 + $0x50] sm:$0xff]
    %v1549 = vld [vmem:[#allocation11 + $0x58] sm:$0xff]
    %v1550 = vld [vmem:[#allocation11 + $0x60] sm:$0xff]
    %v1551 = vld [vmem:[#allocation11 + $0x68] sm:$0xff]
    %v1552 = vld [vmem:[#allocation11 + $0x70] sm:$0xff]
    %v1553 = vld [vmem:[#allocation11 + $0x78] sm:$0xff]
    %1554 = vxpose.xlu0.b32.start [1/16] %v1522, 128
    %1555 = vxpose.xlu0.b32.cont [2/16] %v1523, 128
    %1556 = vxpose.xlu0.b32.cont [3/16] %v1524, 128
    %1557 = vxpose.xlu0.b32.cont [4/16] %v1525, 128
    %1558 = vxpose.xlu0.b32.cont [5/16] %v1526, 128
    %1559 = vxpose.xlu0.b32.cont [6/16] %v1527, 128
    %1560 = vxpose.xlu0.b32.cont [7/16] %v1528, 128
    %1561 = vxpose.xlu0.b32.cont [8/16] %v1529, 128
    %1562 = vxpose.xlu0.b32.cont [9/16] %v1530, 128
    %1563 = vxpose.xlu0.b32.cont [10/16] %v1531, 128
    %1564 = vxpose.xlu0.b32.cont [11/16] %v1532, 128
    %1565 = vxpose.xlu0.b32.cont [12/16] %v1533, 128
    %1566 = vxpose.xlu0.b32.cont [13/16] %v1534, 128
    %1567 = vxpose.xlu0.b32.cont [14/16] %v1535, 128
    %1568 = vxpose.xlu0.b32.cont [15/16] %v1536, 128
    %1569 = vxpose.xlu0.b32.end [16/16] %v1537, 128
    %v1570 = vpop.trf.xlu0
    %v1571 = vpop.trf.xlu0
    %v1572 = vpop.trf.xlu0
    %v1573 = vpop.trf.xlu0
    %v1574 = vpop.trf.xlu0
    %v1575 = vpop.trf.xlu0
    %v1576 = vpop.trf.xlu0
    %v1577 = vpop.trf.xlu0
    %v1578 = vpop.trf.xlu0
    %v1579 = vpop.trf.xlu0
    %v1580 = vpop.trf.xlu0
    %v1581 = vpop.trf.xlu0
    %v1582 = vpop.trf.xlu0
    %v1583 = vpop.trf.xlu0
    %v1584 = vpop.trf.xlu0
    %v1585 = vpop.trf.xlu0
    %1586 = vmatprep.subr.mxu0 0.0
    %1587 = vmatpush1.msra.mxu0 %v1538
    %1588 = vmatprep.subr.mxu0 0.0
    %1589 = vmatpush1.msra.mxu0 %v1539
    %1590 = vmatprep.subr.mxu0 0.0
    %1591 = vmatpush1.msra.mxu0 %v1540
    %1592 = vmatprep.subr.mxu0 0.0
    %1593 = vmatpush1.msra.mxu0 %v1541
    %1594 = vmatprep.subr.mxu0 0.0
    %1595 = vmatpush1.msra.mxu0 %v1542
    %1596 = vmatprep.subr.mxu0 0.0
    %1597 = vmatpush1.msra.mxu0 %v1543
    %1598 = vmatprep.subr.mxu0 0.0
    %1599 = vmatpush1.msra.mxu0 %v1544
    %1600 = vmatprep.subr.mxu0 0.0
    %1601 = vmatpush1.msra.mxu0 %v1545
    %1602 = vmatprep.subr.mxu0 0.0
    %1603 = vmatpush1.msra.mxu0 %v1546
    %1604 = vmatprep.subr.mxu0 0.0
    %1605 = vmatpush1.msra.mxu0 %v1547
    %1606 = vmatprep.subr.mxu0 0.0
    %1607 = vmatpush1.msra.mxu0 %v1548
    %1608 = vmatprep.subr.mxu0 0.0
    %1609 = vmatpush1.msra.mxu0 %v1549
    %1610 = vmatprep.subr.mxu0 0.0
    %1611 = vmatpush1.msra.mxu0 %v1550
    %1612 = vmatprep.subr.mxu0 0.0
    %1613 = vmatpush1.msra.mxu0 %v1551
    %1614 = vmatprep.subr.mxu0 0.0
    %1615 = vmatpush1.msra.mxu0 %v1552
    %1616 = vmatprep.subr.mxu0 0.0
    %1617 = vmatpush1.msra.mxu0 %v1553
    %1618 = vmatprep.subr.mxu0 0.0
    %1619 = vmatpush1.msra.mxu0 0.0
    %1620 = vmatprep.subr.mxu0 0.0
    %1621 = vmatpush1.msra.mxu0 0.0
    %1622 = vmatprep.subr.mxu0 0.0
    %1623 = vmatpush1.msra.mxu0 0.0
    %1624 = vmatprep.subr.mxu0 0.0
    %1625 = vmatpush1.msra.mxu0 0.0
    %1626 = vmatprep.subr.mxu0 0.0
    %1627 = vmatpush1.msra.mxu0 0.0
    %1628 = vmatprep.subr.mxu0 0.0
    %1629 = vmatpush1.msra.mxu0 0.0
    %1630 = vmatprep.subr.mxu0 0.0
    %1631 = vmatpush1.msra.mxu0 0.0
    %1632 = vmatprep.subr.mxu0 0.0
    %1633 = vmatpush1.msra.mxu0 0.0
    %1634 = vmatprep.subr.mxu0 0.0
    %1635 = vmatpush1.msra.mxu0 0.0
    %1636 = vmatprep.subr.mxu0 0.0
    %1637 = vmatpush1.msra.mxu0 0.0
    %1638 = vmatprep.subr.mxu0 0.0
    %1639 = vmatpush1.msra.mxu0 0.0
    %1640 = vmatprep.subr.mxu0 0.0
    %1641 = vmatpush1.msra.mxu0 0.0
    %1642 = vmatprep.subr.mxu0 0.0
    %1643 = vmatpush1.msra.mxu0 0.0
    %1644 = vmatprep.subr.mxu0 0.0
    %1645 = vmatpush1.msra.mxu0 0.0
    %1646 = vmatprep.subr.mxu0 0.0
    %1647 = vmatpush1.msra.mxu0 0.0
    %1648 = vmatprep.subr.mxu0 0.0
    %1649 = vmatpush1.msra.mxu0 0.0
    %1650 = vmatprep.mubr.f32.mxu0 0.0
    %1651 = vmatmul.mubr.f32.gmra.mrb[0].mxu0 %v1570
    %v1652 = vpop.f32.mrb[0].mxu0
    %v1653 = vadd.f32 0.0, %v1652
    %v1654 = vpop.f32.mrb[0].mxu0
    %1655 = vdwg.mxu0
    %1656 = vst [vmem:[#allocation16] sm:$0x1] %v1653
    %vm1657 = vcmask 7168
    %v1658 = vsel %vm1657, %v1522, -inf
    %v1659 = vsel %vm1657, %v1523, -inf
    %v1660 = vsel %vm1657, %v1524, -inf
    %v1661 = vsel %vm1657, %v1525, -inf
    %v1662 = vsel %vm1657, %v1526, -inf
    %v1663 = vmax.f32 %v1658, %v1662
    %v1664 = vsel %vm1657, %v1527, -inf
    %v1665 = vmax.f32 %v1659, %v1664
    %v1666 = vsel %vm1657, %v1528, -inf
    %v1667 = vmax.f32 %v1660, %v1666
    %v1668 = vsel %vm1657, %v1529, -inf
    %v1669 = vmax.f32 %v1661, %v1668
    %v1670 = vsel %vm1657, %v1530, -inf
    %v1671 = vmax.f32 %v1663, %v1670
    %v1672 = vsel %vm1657, %v1531, -inf
    %v1673 = vmax.f32 %v1665, %v1672
    %v1674 = vsel %vm1657, %v1532, -inf
    %v1675 = vmax.f32 %v1667, %v1674
    %v1676 = vsel %vm1657, %v1533, -inf
    %v1677 = vmax.f32 %v1669, %v1676
    %v1678 = vsel %vm1657, %v1534, -inf
    %v1679 = vmax.f32 %v1671, %v1678
    %v1680 = vsel %vm1657, %v1535, -inf
    %v1681 = vmax.f32 %v1673, %v1680
    %v1682 = vsel %vm1657, %v1536, -inf
    %v1683 = vmax.f32 %v1675, %v1682
    %v1684 = vsel %vm1657, %v1537, -inf
    %v1685 = vmax.f32 %v1677, %v1684
    %v1686 = vmax.f32 %v1679, %v1681
    %v1687 = vmax.f32 %v1683, %v1685
    %v1688 = vmax.f32 %v1686, %v1687
    %v1689 = vrot.slane %v1688, 4
    %v1690 = vmax.f32 %v1688, %v1689
    %v1691 = vrot.slane %v1690, 2
    %v1692 = vmax.f32 %v1690, %v1691
    %v1693 = vrot.slane %v1692, 1
    %v1694 = vmax.f32 %v1692, %v1693
    %v1695 = vld [vmem:[#allocation2] sm:$0x1]
    %v1696 = vmax.f32 %v1695, %v1694
    %v1697 = vsub.f32 %v1695, %v1696
    %v1698 = vmul.f32 %v1697, 1.442695
    %v1699 = vpow.pop %v1698
    %v1701 = vlaneseq
    %v1702 = vshrl.u32 %v1701, 7
    %v1703 = vsub.s32 0, %v1702
    %v1704 = vrot.slane %v1696, %v1703
    %v1706 = vsub.f32 %v1522, %v1704
    %v1707 = vsub.f32 %v1523, %v1704
    %v1708 = vsub.f32 %v1524, %v1704
    %v1709 = vsub.f32 %v1525, %v1704
    %v1710 = vsub.f32 %v1526, %v1704
    %v1711 = vsub.f32 %v1527, %v1704
    %v1712 = vsub.f32 %v1528, %v1704
    %v1713 = vsub.f32 %v1529, %v1704
    %v1714 = vsub.f32 %v1530, %v1704
    %v1715 = vsub.f32 %v1531, %v1704
    %v1716 = vsub.f32 %v1532, %v1704
    %v1717 = vsub.f32 %v1533, %v1704
    %v1718 = vsub.f32 %v1534, %v1704
    %v1719 = vsub.f32 %v1535, %v1704
    %v1720 = vsub.f32 %v1536, %v1704
    %v1721 = vsub.f32 %v1537, %v1704
    %v1722 = vmul.f32 %v1706, 1.442695
    %v1723 = vpow.pop %v1722
    %v1724 = vmul.f32 %v1707, 1.442695
    %v1725 = vpow.pop %v1724
    %v1726 = vmul.f32 %v1708, 1.442695
    %v1727 = vpow.pop %v1726
    %v1728 = vmul.f32 %v1709, 1.442695
    %v1729 = vpow.pop %v1728
    %v1730 = vmul.f32 %v1710, 1.442695
    %v1731 = vpow.pop %v1730
    %v1732 = vmul.f32 %v1711, 1.442695
    %v1733 = vpow.pop %v1732
    %v1734 = vmul.f32 %v1712, 1.442695
    %v1735 = vpow.pop %v1734
    %v1736 = vmul.f32 %v1713, 1.442695
    %v1737 = vpow.pop %v1736
    %v1738 = vmul.f32 %v1714, 1.442695
    %v1739 = vpow.pop %v1738
    %v1740 = vmul.f32 %v1715, 1.442695
    %v1741 = vpow.pop %v1740
    %v1742 = vmul.f32 %v1716, 1.442695
    %v1743 = vpow.pop %v1742
    %v1744 = vmul.f32 %v1717, 1.442695
    %v1745 = vpow.pop %v1744
    %v1746 = vmul.f32 %v1718, 1.442695
    %v1747 = vpow.pop %v1746
    %v1748 = vmul.f32 %v1719, 1.442695
    %v1749 = vpow.pop %v1748
    %v1750 = vmul.f32 %v1720, 1.442695
    %v1751 = vpow.pop %v1750
    %v1752 = vmul.f32 %v1721, 1.442695
    %v1753 = vpow.pop %v1752
    %v1754 = vld [vmem:[#allocation3] sm:$0x1]
    %v1755 = vmul.f32 %v1699, %v1754
    %v1756 = vsel %vm1657, %v1723, 0.0
    %v1757 = vsel %vm1657, %v1725, 0.0
    %v1758 = vadd.f32 %v1756, %v1757
    %v1759 = vsel %vm1657, %v1727, 0.0
    %v1760 = vadd.f32 %v1758, %v1759
    %v1761 = vsel %vm1657, %v1729, 0.0
    %v1762 = vadd.f32 %v1760, %v1761
    %v1763 = vsel %vm1657, %v1731, 0.0
    %v1764 = vadd.f32 %v1762, %v1763
    %v1765 = vsel %vm1657, %v1733, 0.0
    %v1766 = vadd.f32 %v1764, %v1765
    %v1767 = vsel %vm1657, %v1735, 0.0
    %v1768 = vadd.f32 %v1766, %v1767
    %v1769 = vsel %vm1657, %v1737, 0.0
    %v1770 = vadd.f32 %v1768, %v1769
    %v1771 = vsel %vm1657, %v1739, 0.0
    %v1772 = vadd.f32 %v1770, %v1771
    %v1773 = vsel %vm1657, %v1741, 0.0
    %v1774 = vadd.f32 %v1772, %v1773
    %v1775 = vsel %vm1657, %v1743, 0.0
    %v1776 = vadd.f32 %v1774, %v1775
    %v1777 = vsel %vm1657, %v1745, 0.0
    %v1778 = vadd.f32 %v1776, %v1777
    %v1779 = vsel %vm1657, %v1747, 0.0
    %v1780 = vadd.f32 %v1778, %v1779
    %v1781 = vsel %vm1657, %v1749, 0.0
    %v1782 = vadd.f32 %v1780, %v1781
    %v1783 = vsel %vm1657, %v1751, 0.0
    %v1784 = vadd.f32 %v1782, %v1783
    %v1785 = vsel %vm1657, %v1753, 0.0
    %v1786 = vadd.f32 %v1784, %v1785
    %v1787 = vrot.slane %v1786, 4
    %v1788 = vadd.f32 %v1786, %v1787
    %v1789 = vrot.slane %v1788, 2
    %v1790 = vadd.f32 %v1788, %v1789
    %v1791 = vrot.slane %v1790, 1
    %v1792 = vadd.f32 %v1790, %v1791
    %v1793 = vadd.f32 %v1755, %v1792
    %vm1794 = vcmask 0
    %1795 = vst.msk [vmem:[#allocation3] sm:$0x1] %vm1794, %v1793
    %v1796 = vld [vmem:[#allocation4] sm:$0x3]
    %1798 = vset.pattern.permute.xlu0 0
    %1799 = vperm.xlu0 %1798, %v1699
    %v1800 = vpop.permute.xlu0 %1799
    %v1802 = vlaneseq
    %v1803 = vshrl.u32 %v1802, 7
    %v1804 = vsub.s32 0, %v1803
    %v1805 = vrot.slane %v1800, %v1804
    %v1806 = vmul.f32 %v1805, %v1796
    %1808 = vset.pattern.permute.xlu0 0
    %1809 = vperm.xlu0 %1808, %v1723
    %v1810 = vpop.permute.xlu0 %1809
    %1813 = vset.pattern.permute.xlu0 0
    %1814 = vperm.xlu0 %1813, %v1725
    %v1815 = vpop.permute.xlu0 %1814
    %1818 = vset.pattern.permute.xlu0 0
    %1819 = vperm.xlu0 %1818, %v1727
    %v1820 = vpop.permute.xlu0 %1819
    %1823 = vset.pattern.permute.xlu0 0
    %1824 = vperm.xlu0 %1823, %v1729
    %v1825 = vpop.permute.xlu0 %1824
    %1828 = vset.pattern.permute.xlu0 0
    %1829 = vperm.xlu0 %1828, %v1731
    %v1830 = vpop.permute.xlu0 %1829
    %1833 = vset.pattern.permute.xlu0 0
    %1834 = vperm.xlu0 %1833, %v1733
    %v1835 = vpop.permute.xlu0 %1834
    %1838 = vset.pattern.permute.xlu0 0
    %1839 = vperm.xlu0 %1838, %v1735
    %v1840 = vpop.permute.xlu0 %1839
    %1843 = vset.pattern.permute.xlu0 0
    %1844 = vperm.xlu0 %1843, %v1737
    %v1845 = vpop.permute.xlu0 %1844
    %1848 = vset.pattern.permute.xlu0 0
    %1849 = vperm.xlu0 %1848, %v1739
    %v1850 = vpop.permute.xlu0 %1849
    %1853 = vset.pattern.permute.xlu0 0
    %1854 = vperm.xlu0 %1853, %v1741
    %v1855 = vpop.permute.xlu0 %1854
    %1858 = vset.pattern.permute.xlu0 0
    %1859 = vperm.xlu0 %1858, %v1743
    %v1860 = vpop.permute.xlu0 %1859
    %1863 = vset.pattern.permute.xlu0 0
    %1864 = vperm.xlu0 %1863, %v1745
    %v1865 = vpop.permute.xlu0 %1864
    %1868 = vset.pattern.permute.xlu0 0
    %1869 = vperm.xlu0 %1868, %v1747
    %v1870 = vpop.permute.xlu0 %1869
    %1873 = vset.pattern.permute.xlu0 0
    %1874 = vperm.xlu0 %1873, %v1749
    %v1875 = vpop.permute.xlu0 %1874
    %1878 = vset.pattern.permute.xlu0 0
    %1879 = vperm.xlu0 %1878, %v1751
    %v1880 = vpop.permute.xlu0 %1879
    %1883 = vset.pattern.permute.xlu0 0
    %1884 = vperm.xlu0 %1883, %v1753
    %v1885 = vpop.permute.xlu0 %1884
    %v1887 = vmul.f32 %v1810, %v594
    %v1888 = vmul.f32 %v1810, %v595
    %v1889 = vmul.f32 %v1815, %v596
    %v1890 = vmul.f32 %v1815, %v597
    %v1891 = vmul.f32 %v1820, %v598
    %v1892 = vmul.f32 %v1820, %v599
    %v1893 = vmul.f32 %v1825, %v600
    %v1894 = vmul.f32 %v1825, %v601
    %v1895 = vmul.f32 %v1830, %v602
    %v1896 = vmul.f32 %v1830, %v603
    %v1897 = vmul.f32 %v1835, %v604
    %v1898 = vmul.f32 %v1835, %v605
    %v1899 = vmul.f32 %v1840, %v606
    %v1900 = vmul.f32 %v1840, %v607
    %v1901 = vmul.f32 %v1845, %v608
    %v1902 = vmul.f32 %v1845, %v609
    %v1903 = vmul.f32 %v1850, %v610
    %v1904 = vmul.f32 %v1850, %v611
    %v1905 = vmul.f32 %v1855, %v612
    %v1906 = vmul.f32 %v1855, %v613
    %v1907 = vmul.f32 %v1860, %v614
    %v1908 = vmul.f32 %v1860, %v615
    %v1909 = vmul.f32 %v1865, %v616
    %v1910 = vmul.f32 %v1865, %v617
    %v1911 = vmul.f32 %v1870, %v618
    %v1912 = vmul.f32 %v1870, %v619
    %v1913 = vmul.f32 %v1875, %v620
    %v1914 = vmul.f32 %v1875, %v621
    %v1915 = vmul.f32 %v1880, %v622
    %v1916 = vmul.f32 %v1880, %v623
    %v1917 = vmul.f32 %v1885, %v624
    %v1918 = vmul.f32 %v1885, %v625
    %v1919 = vadd.f32 %v1887, %v1889
    %v1920 = vadd.f32 %v1919, %v1891
    %v1921 = vadd.f32 %v1920, %v1893
    %v1922 = vadd.f32 %v1921, %v1895
    %v1923 = vadd.f32 %v1922, %v1897
    %v1924 = vadd.f32 %v1923, %v1899
    %v1925 = vadd.f32 %v1924, %v1901
    %v1926 = vadd.f32 %v1925, %v1903
    %v1927 = vadd.f32 %v1926, %v1905
    %v1928 = vadd.f32 %v1927, %v1907
    %v1929 = vadd.f32 %v1928, %v1909
    %v1930 = vadd.f32 %v1929, %v1911
    %v1931 = vadd.f32 %v1930, %v1913
    %v1932 = vadd.f32 %v1931, %v1915
    %v1933 = vadd.f32 %v1932, %v1917
    %v1934 = vrot.slane %v1933, 4
    %v1935 = vadd.f32 %v1933, %v1934
    %v1936 = vrot.slane %v1935, 2
    %v1937 = vadd.f32 %v1935, %v1936
    %v1938 = vrot.slane %v1937, 1
    %v1939 = vadd.f32 %v1937, %v1938
    %v1940 = vadd.f32 %v1888, %v1890
    %v1941 = vadd.f32 %v1940, %v1892
    %v1942 = vadd.f32 %v1941, %v1894
    %v1943 = vadd.f32 %v1942, %v1896
    %v1944 = vadd.f32 %v1943, %v1898
    %v1945 = vadd.f32 %v1944, %v1900
    %v1946 = vadd.f32 %v1945, %v1902
    %v1947 = vadd.f32 %v1946, %v1904
    %v1948 = vadd.f32 %v1947, %v1906
    %v1949 = vadd.f32 %v1948, %v1908
    %v1950 = vadd.f32 %v1949, %v1910
    %v1951 = vadd.f32 %v1950, %v1912
    %v1952 = vadd.f32 %v1951, %v1914
    %v1953 = vadd.f32 %v1952, %v1916
    %v1954 = vadd.f32 %v1953, %v1918
    %v1955 = vrot.slane %v1954, 4
    %v1956 = vadd.f32 %v1954, %v1955
    %v1957 = vrot.slane %v1956, 2
    %v1958 = vadd.f32 %v1956, %v1957
    %v1959 = vrot.slane %v1958, 1
    %v1960 = vadd.f32 %v1958, %v1959
    %v1963 = vcombine.low %v1939, %v1960
    %v1965 = vunpack.c.l.s4 1966171168
    %v1966 = vunpack.c.0.s8 %v1965
    %v1967 = vlaneseq
    %v1968 = vshrl.u32 %v1967, 7
    %v1969 = vsub.s32 %v1966, %v1968
    %v1970 = vrot.slane %v1963, %v1969
    %v1972 = vunpack.c.l.s4 1966171168
    %v1973 = vunpack.c.0.s8 %v1972
    %v1974 = vlaneseq
    %v1975 = vshrl.u32 %v1974, 7
    %v1976 = vsub.s32 %v1973, %v1975
    %v1977 = vrot.slane %v1970, %v1976
    %v1979 = vadd.f32 %v1806, %v1977
    %v1980 = vlaneseq
    %vm1981 = vcmp.ge.s32.totalorder %v1980, 0
    %vm1982 = vcmp.lt.s32.totalorder %v1980, 256
    %vm1983 = vmand %vm1981, %vm1982
    %1984 = vst.msk [vmem:[#allocation4] sm:$0x3] %vm1983, %v1979
    %1985 = vst.msk [vmem:[#allocation2] sm:$0x1] %vm1794, %v1696
    // Predicated region
    $region54: #{tpu_custom_call.1} parent=1 // pred_check
      %p1986 = pneg %p104
    $region55: #{tpu_custom_call.1} parent=1 // pred_check_branch
      %1988 = sbr.rel (%p1986) target = $region57
    $region56: #{tpu_custom_call.1} parent=1 // pred_region
      %v1989 = vld [vmem:[#allocation2] sm:$0x1]
      %1990 = vst.msk [vmem:[#allocation17] sm:$0x1] %vm1794, %v1989
      %v1991 = vld [vmem:[#allocation3] sm:$0x1]
      %1992 = vst.msk [vmem:[#allocation19] sm:$0x1] %vm1794, %v1991
      %v1993 = vld [vmem:[#allocation4] sm:$0x3]
      %1994 = vst.msk [vmem:[#allocation20] sm:$0x3] %vm1983, %v1993
    $region57: #{tpu_custom_call.1} parent=1 // pred_fallthru
      _
    // Predicated region
    $region58: #{tpu_custom_call.1} parent=1 // pred_check
      _
    $region59: #{tpu_custom_call.1} parent=1 // pred_check_branch
      %1996 = sbr.rel (0) target = $region61
    $region60: #{tpu_custom_call.1} parent=1 // pred_region
      %s1997 = sadd.s32 0, 0
      %s1999 = ssub.s32 16, 16
      %2000 = vsyncadd [#allocation10], %s1999
      %s2001 = smul.addr %s1997, 16
      %s2002 = scalar_lea.hbm %s9, %s2001
      %s2004 = sshll.u32 [#allocation16], 4
      %s2005 = int_to_ptr.vmem [resolvable:$true] %s2004
      %2007 = dma.vmem_to_hbm [thread:$0]  %s2005, 16, %s2002, [#allocation10]
    $region61: #{tpu_custom_call.1} parent=1 // pred_fallthru
      _
    // Predicated region
    $region62: #{tpu_custom_call.1} parent=1 // pred_check
      _
    $region63: #{tpu_custom_call.1} parent=1 // pred_check_branch
      %2009 = sbr.rel (0) target = $region65
    $region64: #{tpu_custom_call.1} parent=1 // pred_region
      %s2011 = ssub.s32 16, 16
      %2012 = vsyncadd [#allocation18], %s2011
      %s2014 = sshll.u32 [#allocation17], 4
      %s2015 = int_to_ptr.vmem [resolvable:$true] %s2014
      %2017 = dma.vmem_to_hbm [thread:$0]  %s2015, 16, %s10, [#allocation18]
    $region65: #{tpu_custom_call.1} parent=1 // pred_fallthru
      _
    // Predicated region
    $region66: #{tpu_custom_call.1} parent=1 // pred_check
      _
    $region67: #{tpu_custom_call.1} parent=1 // pred_check_branch
      %2019 = sbr.rel (0) target = $region69
    $region68: #{tpu_custom_call.1} parent=1 // pred_region
      %s2021 = ssub.s32 16, 16
      %2022 = vsyncadd [#allocation18], %s2021
      %s2024 = sshll.u32 [#allocation19], 4
      %s2025 = int_to_ptr.vmem [resolvable:$true] %s2024
      %2027 = dma.vmem_to_hbm [thread:$0]  %s2025, 16, %s11, [#allocation18]
    $region69: #{tpu_custom_call.1} parent=1 // pred_fallthru
      _
    // Predicated region
    $region70: #{tpu_custom_call.1} parent=1 // pred_check
      _
    $region71: #{tpu_custom_call.1} parent=1 // pred_check_branch
      %2029 = sbr.rel (0) target = $region73
    $region72: #{tpu_custom_call.1} parent=1 // pred_region
      %s2031 = ssub.s32 32, 32
      %2032 = vsyncadd [#allocation21], %s2031
      %s2034 = sshll.u32 [#allocation20], 4
      %s2035 = int_to_ptr.vmem [resolvable:$true] %s2034
      %2037 = dma.vmem_to_hbm [thread:$0]  %s2035, 32, %s12, [#allocation21]
    $region73: #{tpu_custom_call.1} parent=1 // pred_fallthru
      _
    // Predicated region
    $region74: #{tpu_custom_call.1} parent=1 // pred_check
      _
    $region75: #{tpu_custom_call.1} parent=1 // pred_check_branch
      %2039 = sbr.rel (0) target = $region77
    $region76: #{tpu_custom_call.1} parent=1 // pred_region
      %2040 = dma.done [#allocation10], 16
    $region77: #{tpu_custom_call.1} parent=1 // pred_fallthru
      _
    // Predicated region
    $region78: #{tpu_custom_call.1} parent=1 // pred_check
      _
    $region79: #{tpu_custom_call.1} parent=1 // pred_check_branch
      %2042 = sbr.rel (0) target = $region81
    $region80: #{tpu_custom_call.1} parent=1 // pred_region
      %2043 = dma.done [#allocation18], 16
    $region81: #{tpu_custom_call.1} parent=1 // pred_fallthru
      _
    // Predicated region
    $region82: #{tpu_custom_call.1} parent=1 // pred_check
      _
    $region83: #{tpu_custom_call.1} parent=1 // pred_check_branch
      %2045 = sbr.rel (0) target = $region85
    $region84: #{tpu_custom_call.1} parent=1 // pred_region
      %2046 = dma.done [#allocation18], 16
    $region85: #{tpu_custom_call.1} parent=1 // pred_fallthru
      _
    // Predicated region
    $region86: #{tpu_custom_call.1} parent=1 // pred_check
      _
    $region87: #{tpu_custom_call.1} parent=1 // pred_check_branch
      %2048 = sbr.rel (0) target = $region89
    $region88: #{tpu_custom_call.1} parent=1 // pred_region
      %2049 = dma.done [#allocation21], 32
    $region89: #{tpu_custom_call.1} parent=1 // pred_fallthru
      _
    %2050 = vsyncpa [#allocation9], 1
    %2051 = vsyncpa [#allocation12], 1
    %2052 = vsyncpa [#allocation15], 1
    %2053 = vsyncpa [#allocation10], 1
    %2054 = vsyncpa [#allocation18], 1
    %2055 = vsyncpa [#allocation21], 1

</llo_original>
